<compile_context>
chip_gen: v6e
topology: v6e:2x2x1
jax: 0.10.0
libtpu: 0.0.40
codegen_flags: <defaults>
</compile_context>

<pallas_src>
import jax
import jax.numpy as jnp
from jax.experimental import pallas as pl
from jax.experimental.pallas import tpu as pltpu


# ----------------------------- Pallas kernel --------------------------------
def ms_cam_kernel(x_ref, xg_ref, w1_ref, b1_ref, w2_ref, b2_ref, o_ref):
    """One (T, Cp) row-tile of one image.

    x_ref : (T, Cp)   compute dtype (bf16 or f32)
    xg_ref: (1, Cp)   f32 -- precomputed global-branch logits for this image
    w1/w2 : (Cp, IC) / (IC, Cp) compute dtype (BN folded)
    b1/b2 : (1, IC)  / (1, Cp)  f32          (BN folded)
    """
    x = x_ref[...]

    # local branch: conv1x1 -> (BN) -> ReLU -> conv1x1 -> (BN); f32 accumulate
    h = jnp.dot(x, w1_ref[...], preferred_element_type=jnp.float32) + b1_ref[...]
    h = jnp.maximum(h, 0.0)
    xl = (jnp.dot(h.astype(w2_ref.dtype), w2_ref[...],
                  preferred_element_type=jnp.float32) + b2_ref[...])

    # fuse with the (precomputed) global branch; gate stays in f32
    wei = jax.nn.sigmoid(xl + xg_ref[...])                 # (T, Cp) f32
    o_ref[...] = (x.astype(jnp.float32) * wei).astype(o_ref.dtype)


# ----------------------------- wrapper ---------------------------------------
def _round_up(x, m):
    return ((x + m - 1) // m) * m


def _choose_tile_rows(hw, c_pad, x_itemsize, max_rows=512,
                      vmem_tile_budget=32 * 1024 * 1024):
    """Largest multiple-of-8 row tile so double-buffered in+out tiles fit."""
    per_row = 4 * c_pad * x_itemsize              # 2 buffers x (input + output)
    t = min(max_rows, max(8, vmem_tile_budget // max(per_row, 1)))
    t = min(t, _round_up(hw, 8))
    return max(8, (t // 8) * 8)


def ms_cam_forward(x_nchw, params, *, compute_dtype=jnp.bfloat16,
                   max_tile_rows=512):
    """MS_CAM forward. x_nchw: (N, C, H, W) f32. params: folded weights."""
    N, C, H, W = x_nchw.shape
    HW = H * W
    IC = params["w1"].shape[1]

    x = x_nchw.transpose(0, 2, 3, 1).reshape(N, HW, C).astype(jnp.float32)

    # ---- global branch hoisted to the wrapper (O(N*C) work, full-HW mean) ----
    xp = jnp.mean(x, axis=1, keepdims=True)                       # (N, 1, C)
    g = jnp.maximum(xp @ params["gw1"] + params["gb1"], 0.0)
    xg = g @ params["gw2"] + params["gb2"]                        # (N, 1, C) f32

    # ---- pad channels to 128 lanes, HW to the row tile -----------------------
    Cp = _round_up(C, 128)
    x_itemsize = jnp.dtype(compute_dtype).itemsize
    T = _choose_tile_rows(HW, Cp, x_itemsize, max_rows=max_tile_rows)
    HWp = _round_up(HW, T)

    x_pad = jnp.zeros((N, HWp, Cp), compute_dtype).at[:, :HW, :C].set(
        x.astype(compute_dtype))
    xg_pad = jnp.zeros((N, 1, Cp), jnp.float32).at[:, :, :C].set(xg)
    w1 = jnp.zeros((Cp, IC), compute_dtype).at[:C, :].set(
        params["w1"].astype(compute_dtype))
    b1 = params["b1"].astype(jnp.float32).reshape(1, IC)
    w2 = jnp.zeros((IC, Cp), compute_dtype).at[:, :C].set(
        params["w2"].astype(compute_dtype))
    b2 = jnp.zeros((1, Cp), jnp.float32).at[:, :C].set(
        params["b2"].astype(jnp.float32).reshape(1, C))

    # ---- VMEM budget (v7x: 64 MiB physical) ----------------------------------
    tile_bytes = T * Cp * x_itemsize
    wgt_bytes = 2 * Cp * IC * x_itemsize
    small_bytes = 4 * 8 * max(Cp, 128) * 4          # padded biases + xg
    vmem_bytes = 2 * (2 * tile_bytes + wgt_bytes + small_bytes) + (2 << 20)
    vmem_limit = int(min(max(vmem_bytes, 32 * 1024 * 1024), 48 * 1024 * 1024))

    grid = (N, HWp // T)

    def build(weight_pipeline_mode):
        const_kwargs = ({} if weight_pipeline_mode is None
                        else {"pipeline_mode": weight_pipeline_mode})

        def const2d(shape):   # grid-invariant operands (weights / biases)
            return pl.BlockSpec(shape, lambda n, h: (0, 0), **const_kwargs)

        return pl.pallas_call(
            ms_cam_kernel,
            out_shape=jax.ShapeDtypeStruct((N, HWp, Cp), compute_dtype),
            grid_spec=pltpu.PrefetchScalarGridSpec(
                num_scalar_prefetch=0,
                grid=grid,
                in_specs=[
                    # leading batch dim squeezed (None == pl.Squeezed())
                    pl.BlockSpec((None, T, Cp), lambda n, h: (n, h, 0)),
                    pl.BlockSpec((None, 1, Cp), lambda n, h: (n, 0, 0)),
                    const2d((Cp, IC)),
                    const2d((1, IC)),
                    const2d((IC, Cp)),
                    const2d((1, Cp)),
                ],
                out_specs=pl.BlockSpec((None, T, Cp), lambda n, h: (n, h, 0)),
            ),
            compiler_params=pltpu.CompilerParams(
                dimension_semantics=("parallel", "parallel"),
                vmem_limit_bytes=vmem_limit,
            ),
        )

    args = (x_pad, xg_pad, w1, b1, w2, b2)
    try:
        # single-buffer the constant weight/bias operands (saves VMEM headroom)
        out_pad = jax.block_until_ready(build(pl.Buffered(1))(*args))
    except Exception:
        # Fallback for JAX versions without single-buffer pipeline_mode support.
        out_pad = build(None)(*args)

    out = out_pad[:, :HW, :C].astype(x_nchw.dtype)
    return out.reshape(N, H, W, C).transpose(0, 3, 1, 2)      # back to NCHW


# ----------------------------- parameter setup ------------------------------
def fold_bn(w, b, gamma, beta, mean, var, eps=1e-5):
    """Fold eval-mode BatchNorm into a preceding 1x1 conv. w:(Cin,Cout), b:(Cout,)."""
    s = gamma / jnp.sqrt(var + eps)
    return w * s[None, :], (b - mean) * s + beta


def make_params(key, channels, r):
    inter = channels // r
    ks = iter(jax.random.split(key, 24))

    def conv_bn(cin, cout):
        w = 0.1 * jax.random.normal(next(ks), (cin, cout), jnp.float32)
        b = 0.1 * jax.random.normal(next(ks), (cout,), jnp.float32)
        gamma = 1.0 + 0.1 * jax.random.normal(next(ks), (cout,), jnp.float32)
        beta = 0.1 * jax.random.normal(next(ks), (cout,), jnp.float32)
        mean = 0.05 * jax.random.normal(next(ks), (cout,), jnp.float32)
        var = 0.8 + 0.2 * jnp.abs(jax.random.normal(next(ks), (cout,), jnp.float32))
        return fold_bn(w, b, gamma, beta, mean, var)

    lw1, lb1 = conv_bn(channels, inter)
    lw2, lb2 = conv_bn(inter, channels)
    gw1, gb1 = conv_bn(channels, inter)
    gw2, gb2 = conv_bn(inter, channels)
    return {"w1": lw1, "b1": lb1, "w2": lw2, "b2": lb2,
            "gw1": gw1, "gb1": gb1, "gw2": gw2, "gb2": gb2}


# ----------------------------- reference (plain JAX) ------------------------
def ms_cam_ref(x_nchw, p):
    N, C, H, W = x_nchw.shape
    x = x_nchw.transpose(0, 2, 3, 1).reshape(N, H * W, C)     # (N, HW, C)
    xl = jnp.maximum(x @ p["w1"] + p["b1"], 0.0) @ p["w2"] + p["b2"]
    xp = jnp.mean(x, axis=1, keepdims=True)                   # (N, 1, C)
    xg = jnp.maximum(xp @ p["gw1"] + p["gb1"], 0.0) @ p["gw2"] + p["gb2"]
    out = x * jax.nn.sigmoid(xl + xg)
    return out.reshape(N, H, W, C).transpose(0, 3, 1, 2)      # back to NCHW


# ----------------------------------- main ------------------------------------
if __name__ == "__main__":
    N, C, H, W = 2, 64, 16, 16    # module defaults: channels=64, r=4
    r = 4

    key = jax.random.PRNGKey(0)
    kx, kp = jax.random.split(key)
    x_nchw = jax.random.normal(kx, (N, C, H, W), jnp.float32)
    params = make_params(kp, C, r)

    ref = ms_cam_ref(x_nchw, params)

    # f32 run: strict semantics check (max_tile_rows=128 -> grid (2, 2))
    out_f32 = jax.block_until_ready(
        ms_cam_forward(x_nchw, params, compute_dtype=jnp.float32,
                       max_tile_rows=128))
    assert out_f32.shape == (N, C, H, W)
    assert jnp.allclose(out_f32, ref, atol=1e-5, rtol=1e-5), \
        "f32 mismatch vs. reference"

    # bf16 I/O run (production config: halves HBM traffic); bf16-level tolerance
    out_bf16 = jax.block_until_ready(
        ms_cam_forward(x_nchw, params, compute_dtype=jnp.bfloat16,
                       max_tile_rows=128))
    assert out_bf16.shape == (N, C, H, W)
    assert jnp.allclose(out_bf16, ref, atol=1e-1, rtol=1e-1), \
        "bf16 mismatch vs. reference"

    print("KERNEL_OK")
</pallas_src>

<mosaic_0001>
module attributes {stable_mosaic.version = 11 : i64} {
  func.func @ms_cam_kernel(%arg0: i32, %arg1: i32, %arg2: memref<1x128x128xf32, #tpu.memory_space<vmem>>, %arg3: memref<1x1x128xf32, #tpu.memory_space<vmem>>, %arg4: memref<128x16xf32, #tpu.memory_space<vmem>>, %arg5: memref<1x16xf32, #tpu.memory_space<vmem>>, %arg6: memref<16x128xf32, #tpu.memory_space<vmem>>, %arg7: memref<1x128xf32, #tpu.memory_space<vmem>>, %arg8: memref<1x128x128xf32, #tpu.memory_space<vmem>>) attributes {dimension_semantics = [#tpu.dimension_semantics<parallel>, #tpu.dimension_semantics<parallel>], iteration_bounds = array<i64: 2, 2>, scalar_prefetch = 0 : i64, scratch_operands = 0 : i64, tpu.core_type = #tpu.core_type<tc>, window_params = [{transform_indices = @transform_0, window_bounds = array<i64: 1, 128, 128>}, {transform_indices = @transform_1, window_bounds = array<i64: 1, 1, 128>}, {pipeline_mode = #tpu.pipeline_mode<synchronous>, transform_indices = @transform_2, window_bounds = array<i64: 128, 16>}, {pipeline_mode = #tpu.pipeline_mode<synchronous>, transform_indices = @transform_3, window_bounds = array<i64: 1, 16>}, {pipeline_mode = #tpu.pipeline_mode<synchronous>, transform_indices = @transform_4, window_bounds = array<i64: 16, 128>}, {pipeline_mode = #tpu.pipeline_mode<synchronous>, transform_indices = @transform_5, window_bounds = array<i64: 1, 128>}, {transform_indices = @transform_6, window_bounds = array<i64: 1, 128, 128>}]} {
    %c0 = arith.constant 0 : index
    %c0_0 = arith.constant 0 : index
    %c0_1 = arith.constant 0 : index
    %0 = vector.load %arg2[%c0, %c0_0, %c0_1] : memref<1x128x128xf32, #tpu.memory_space<vmem>>, vector<1x128x128xf32>
    %1 = vector.shape_cast %0 : vector<1x128x128xf32> to vector<128x128xf32>
    %c0_2 = arith.constant 0 : index
    %c0_3 = arith.constant 0 : index
    %2 = vector.load %arg4[%c0_2, %c0_3] : memref<128x16xf32, #tpu.memory_space<vmem>>, vector<128x16xf32>
    %cst = arith.constant dense<0.000000e+00> : vector<128x16xf32>
    %3 = tpu.matmul %1, %2, %cst {dimension_numbers = #tpu.dot_dimension_numbers<[1], [0], [0], [1], [0, 0, 1, 1], [], []>} : vector<128x128xf32>, vector<128x16xf32>, vector<128x16xf32> -> vector<128x16xf32>
    %c0_4 = arith.constant 0 : index
    %c0_5 = arith.constant 0 : index
    %4 = vector.load %arg5[%c0_4, %c0_5] : memref<1x16xf32, #tpu.memory_space<vmem>>, vector<1x16xf32>
    %5 = vector.broadcast %4 : vector<1x16xf32> to vector<128x16xf32>
    %6 = arith.addf %3, %5 : vector<128x16xf32>
    %cst_6 = arith.constant 0.000000e+00 : f32
    %7 = vector.broadcast %cst_6 : f32 to vector<128x16xf32>
    %8 = arith.maximumf %6, %7 : vector<128x16xf32>
    %c0_7 = arith.constant 0 : index
    %c0_8 = arith.constant 0 : index
    %9 = vector.load %arg6[%c0_7, %c0_8] : memref<16x128xf32, #tpu.memory_space<vmem>>, vector<16x128xf32>
    %cst_9 = arith.constant dense<0.000000e+00> : vector<128x128xf32>
    %10 = tpu.matmul %8, %9, %cst_9 {dimension_numbers = #tpu.dot_dimension_numbers<[1], [0], [0], [1], [0, 0, 1, 1], [], []>} : vector<128x16xf32>, vector<16x128xf32>, vector<128x128xf32> -> vector<128x128xf32>
    %c0_10 = arith.constant 0 : index
    %c0_11 = arith.constant 0 : index
    %11 = vector.load %arg7[%c0_10, %c0_11] : memref<1x128xf32, #tpu.memory_space<vmem>>, vector<1x128xf32>
    %12 = vector.broadcast %11 : vector<1x128xf32> to vector<128x128xf32>
    %13 = arith.addf %10, %12 : vector<128x128xf32>
    %c0_12 = arith.constant 0 : index
    %c0_13 = arith.constant 0 : index
    %c0_14 = arith.constant 0 : index
    %14 = vector.load %arg3[%c0_12, %c0_13, %c0_14] : memref<1x1x128xf32, #tpu.memory_space<vmem>>, vector<1x1x128xf32>
    %15 = vector.shape_cast %14 : vector<1x1x128xf32> to vector<1x128xf32>
    %16 = vector.broadcast %15 : vector<1x128xf32> to vector<128x128xf32>
    %17 = arith.addf %13, %16 : vector<128x128xf32>
    %18 = arith.negf %17 : vector<128x128xf32>
    %19 = math.exp %18 : vector<128x128xf32>
    %cst_15 = arith.constant 1.000000e+00 : f32
    %20 = vector.broadcast %cst_15 : f32 to vector<128x128xf32>
    %21 = arith.addf %20, %19 : vector<128x128xf32>
    %22 = arith.divf %20, %21 : vector<128x128xf32>
    %23 = arith.mulf %1, %22 : vector<128x128xf32>
    %c0_16 = arith.constant 0 : index
    %c0_17 = arith.constant 0 : index
    %c0_18 = arith.constant 0 : index
    %24 = vector.load %arg8[%c0_16, %c0_17, %c0_18] : memref<1x128x128xf32, #tpu.memory_space<vmem>>, vector<1x128x128xf32>
    %25 = vector.shape_cast %24 : vector<1x128x128xf32> to vector<128x128xf32>
    %26 = vector.shape_cast %23 : vector<128x128xf32> to vector<1x128x128xf32>
    tpu.vector_store %arg8[%c0_16, %c0_17, %c0_18], %26 {strides = array<i32>} : memref<1x128x128xf32, #tpu.memory_space<vmem>>, vector<1x128x128xf32>,
    return
  }
  func.func @transform_0(%arg0: i32, %arg1: i32) -> (i32, i32, i32) {
    %c0_i32 = arith.constant 0 : i32
    %c0_i32_0 = arith.constant 0 : i32
    return %arg0, %arg1, %c0_i32 : i32, i32, i32
  }
  func.func @transform_1(%arg0: i32, %arg1: i32) -> (i32, i32, i32) {
    %c0_i32 = arith.constant 0 : i32
    %c0_i32_0 = arith.constant 0 : i32
    %c0_i32_1 = arith.constant 0 : i32
    return %arg0, %c0_i32, %c0_i32_0 : i32, i32, i32
  }
  func.func @transform_2(%arg0: i32, %arg1: i32) -> (i32, i32) {
    %c0_i32 = arith.constant 0 : i32
    %c0_i32_0 = arith.constant 0 : i32
    %c0_i32_1 = arith.constant 0 : i32
    return %c0_i32, %c0_i32_0 : i32, i32
  }
  func.func @transform_3(%arg0: i32, %arg1: i32) -> (i32, i32) {
    %c0_i32 = arith.constant 0 : i32
    %c0_i32_0 = arith.constant 0 : i32
    %c0_i32_1 = arith.constant 0 : i32
    return %c0_i32, %c0_i32_0 : i32, i32
  }
  func.func @transform_4(%arg0: i32, %arg1: i32) -> (i32, i32) {
    %c0_i32 = arith.constant 0 : i32
    %c0_i32_0 = arith.constant 0 : i32
    %c0_i32_1 = arith.constant 0 : i32
    return %c0_i32, %c0_i32_0 : i32, i32
  }
  func.func @transform_5(%arg0: i32, %arg1: i32) -> (i32, i32) {
    %c0_i32 = arith.constant 0 : i32
    %c0_i32_0 = arith.constant 0 : i32
    %c0_i32_1 = arith.constant 0 : i32
    return %c0_i32, %c0_i32_0 : i32, i32
  }
  func.func @transform_6(%arg0: i32, %arg1: i32) -> (i32, i32, i32) {
    %c0_i32 = arith.constant 0 : i32
    %c0_i32_0 = arith.constant 0 : i32
    return %arg0, %arg1, %c0_i32 : i32, i32, i32
  }
}

module attributes {stable_mosaic.version = 11 : i64} {
  func.func @ms_cam_kernel(%arg0: i32, %arg1: i32, %arg2: memref<1x128x128xf32, #tpu.memory_space<vmem>>, %arg3: memref<1x1x128xf32, #tpu.memory_space<vmem>>, %arg4: memref<128x16xf32, #tpu.memory_space<vmem>>, %arg5: memref<1x16xf32, #tpu.memory_space<vmem>>, %arg6: memref<16x128xf32, #tpu.memory_space<vmem>>, %arg7: memref<1x128xf32, #tpu.memory_space<vmem>>, %arg8: memref<1x128x128xf32, #tpu.memory_space<vmem>>) attributes {dimension_semantics = [#tpu.dimension_semantics<parallel>, #tpu.dimension_semantics<parallel>], iteration_bounds = array<i64: 2, 2>, scalar_prefetch = 0 : i64, scratch_operands = 0 : i64, tpu.core_type = #tpu.core_type<tc>, window_params = [{transform_indices = @transform_0, window_bounds = array<i64: 1, 128, 128>}, {transform_indices = @transform_1, window_bounds = array<i64: 1, 1, 128>}, {pipeline_mode = #tpu.pipeline_mode<synchronous>, transform_indices = @transform_2, window_bounds = array<i64: 128, 16>}, {pipeline_mode = #tpu.pipeline_mode<synchronous>, transform_indices = @transform_3, window_bounds = array<i64: 1, 16>}, {pipeline_mode = #tpu.pipeline_mode<synchronous>, transform_indices = @transform_4, window_bounds = array<i64: 16, 128>}, {pipeline_mode = #tpu.pipeline_mode<synchronous>, transform_indices = @transform_5, window_bounds = array<i64: 1, 128>}, {transform_indices = @transform_6, window_bounds = array<i64: 1, 128, 128>}]} {
    %c0 = arith.constant 0 : index
    %c0_0 = arith.constant 0 : index
    %c0_1 = arith.constant 0 : index
    %0 = vector.load %arg2[%c0, %c0_0, %c0_1] : memref<1x128x128xf32, #tpu.memory_space<vmem>>, vector<1x128x128xf32>
    %1 = vector.shape_cast %0 : vector<1x128x128xf32> to vector<128x128xf32>
    %c0_2 = arith.constant 0 : index
    %c0_3 = arith.constant 0 : index
    %2 = vector.load %arg4[%c0_2, %c0_3] : memref<128x16xf32, #tpu.memory_space<vmem>>, vector<128x16xf32>
    %cst = arith.constant dense<0.000000e+00> : vector<128x16xf32>
    %3 = tpu.matmul %1, %2, %cst {dimension_numbers = #tpu.dot_dimension_numbers<[1], [0], [0], [1], [0, 0, 1, 1], [], []>} : vector<128x128xf32>, vector<128x16xf32>, vector<128x16xf32> -> vector<128x16xf32>
    %c0_4 = arith.constant 0 : index
    %c0_5 = arith.constant 0 : index
    %4 = vector.load %arg5[%c0_4, %c0_5] : memref<1x16xf32, #tpu.memory_space<vmem>>, vector<1x16xf32>
    %5 = vector.broadcast %4 : vector<1x16xf32> to vector<128x16xf32>
    %6 = arith.addf %3, %5 : vector<128x16xf32>
    %cst_6 = arith.constant 0.000000e+00 : f32
    %7 = vector.broadcast %cst_6 : f32 to vector<128x16xf32>
    %8 = arith.maximumf %6, %7 : vector<128x16xf32>
    %c0_7 = arith.constant 0 : index
    %c0_8 = arith.constant 0 : index
    %9 = vector.load %arg6[%c0_7, %c0_8] : memref<16x128xf32, #tpu.memory_space<vmem>>, vector<16x128xf32>
    %cst_9 = arith.constant dense<0.000000e+00> : vector<128x128xf32>
    %10 = tpu.matmul %8, %9, %cst_9 {dimension_numbers = #tpu.dot_dimension_numbers<[1], [0], [0], [1], [0, 0, 1, 1], [], []>} : vector<128x16xf32>, vector<16x128xf32>, vector<128x128xf32> -> vector<128x128xf32>
    %c0_10 = arith.constant 0 : index
    %c0_11 = arith.constant 0 : index
    %11 = vector.load %arg7[%c0_10, %c0_11] : memref<1x128xf32, #tpu.memory_space<vmem>>, vector<1x128xf32>
    %12 = vector.broadcast %11 : vector<1x128xf32> to vector<128x128xf32>
    %13 = arith.addf %10, %12 : vector<128x128xf32>
    %c0_12 = arith.constant 0 : index
    %c0_13 = arith.constant 0 : index
    %c0_14 = arith.constant 0 : index
    %14 = vector.load %arg3[%c0_12, %c0_13, %c0_14] : memref<1x1x128xf32, #tpu.memory_space<vmem>>, vector<1x1x128xf32>
    %15 = vector.shape_cast %14 : vector<1x1x128xf32> to vector<1x128xf32>
    %16 = vector.broadcast %15 : vector<1x128xf32> to vector<128x128xf32>
    %17 = arith.addf %13, %16 : vector<128x128xf32>
    %18 = arith.negf %17 : vector<128x128xf32>
    %19 = math.exp %18 : vector<128x128xf32>
    %cst_15 = arith.constant 1.000000e+00 : f32
    %20 = vector.broadcast %cst_15 : f32 to vector<128x128xf32>
    %21 = arith.addf %20, %19 : vector<128x128xf32>
    %22 = arith.divf %20, %21 : vector<128x128xf32>
    %23 = arith.mulf %1, %22 : vector<128x128xf32>
    %c0_16 = arith.constant 0 : index
    %c0_17 = arith.constant 0 : index
    %c0_18 = arith.constant 0 : index
    %24 = vector.load %arg8[%c0_16, %c0_17, %c0_18] : memref<1x128x128xf32, #tpu.memory_space<vmem>>, vector<1x128x128xf32>
    %25 = vector.shape_cast %24 : vector<1x128x128xf32> to vector<128x128xf32>
    %26 = vector.shape_cast %23 : vector<128x128xf32> to vector<1x128x128xf32>
    tpu.vector_store %arg8[%c0_16, %c0_17, %c0_18], %26 {strides = array<i32>} : memref<1x128x128xf32, #tpu.memory_space<vmem>>, vector<1x128x128xf32>,
    return
  }
  func.func @transform_0(%arg0: i32, %arg1: i32) -> (i32, i32, i32) {
    %c0_i32 = arith.constant 0 : i32
    %c0_i32_0 = arith.constant 0 : i32
    return %arg0, %arg1, %c0_i32 : i32, i32, i32
  }
  func.func @transform_1(%arg0: i32, %arg1: i32) -> (i32, i32, i32) {
    %c0_i32 = arith.constant 0 : i32
    %c0_i32_0 = arith.constant 0 : i32
    %c0_i32_1 = arith.constant 0 : i32
    return %arg0, %c0_i32, %c0_i32_0 : i32, i32, i32
  }
  func.func @transform_2(%arg0: i32, %arg1: i32) -> (i32, i32) {
    %c0_i32 = arith.constant 0 : i32
    %c0_i32_0 = arith.constant 0 : i32
    %c0_i32_1 = arith.constant 0 : i32
    return %c0_i32, %c0_i32_0 : i32, i32
  }
  func.func @transform_3(%arg0: i32, %arg1: i32) -> (i32, i32) {
    %c0_i32 = arith.constant 0 : i32
    %c0_i32_0 = arith.constant 0 : i32
    %c0_i32_1 = arith.constant 0 : i32
    return %c0_i32, %c0_i32_0 : i32, i32
  }
  func.func @transform_4(%arg0: i32, %arg1: i32) -> (i32, i32) {
    %c0_i32 = arith.constant 0 : i32
    %c0_i32_0 = arith.constant 0 : i32
    %c0_i32_1 = arith.constant 0 : i32
    return %c0_i32, %c0_i32_0 : i32, i32
  }
  func.func @transform_5(%arg0: i32, %arg1: i32) -> (i32, i32) {
    %c0_i32 = arith.constant 0 : i32
    %c0_i32_0 = arith.constant 0 : i32
    %c0_i32_1 = arith.constant 0 : i32
    return %c0_i32, %c0_i32_0 : i32, i32
  }
  func.func @transform_6(%arg0: i32, %arg1: i32) -> (i32, i32, i32) {
    %c0_i32 = arith.constant 0 : i32
    %c0_i32_0 = arith.constant 0 : i32
    return %arg0, %arg1, %c0_i32 : i32, i32, i32
  }
}

</mosaic_0001>

<llo_original>
// kernel: tpu_custom_call.1
$region0: #{tpu_custom_call.1}
  #allocation0 [shape = 'u32[]', space=smem, size = 0x4, offset = 0x4, fixed_abs, tag = 'smem constant byte address 0x4 - core index']
  #allocation1 [shape = 'u32[144,128]{1,0:T(1,128)}', space=vmem, size = 0x12000, scoped, tag = 'internal scratch']
  %s0 = inlined_call_operand.hbm [shape: f32[2,256,128], index: 0, kind: input, shape index: {}]
  %s1 = inlined_call_operand.vmem [shape: f32[2,1,128], index: 1, kind: input, shape index: {}]
  %s2 = inlined_call_operand.vmem [shape: f32[128,16], index: 2, kind: input, shape index: {}]
  %s3 = inlined_call_operand.vmem [shape: f32[1,16], index: 3, kind: input, shape index: {}]
  %s4 = inlined_call_operand.vmem [shape: f32[16,128], index: 4, kind: input, shape index: {}]
  %s5 = inlined_call_operand.vmem [shape: f32[1,128], index: 5, kind: input, shape index: {}]
  %s6 = inlined_call_operand.hbm [shape: f32[2,256,128], index: 6, kind: output, shape index: {}]
  %s7 = sld [smem:[#allocation0]]
  $region61: #{tpu_custom_call.1} parent=0
    _
  %s9 = ssub.s32 1, %s7
  %s10 = scalar_select 0, %s9, %s7
  $region1: #{tpu_custom_call.1} parent=0
    #allocation2 [shape = 'u8[131072]{0}', space=vmem, size = 0x20000, scoped, tag = 'input window, operand 0']
    #allocation3 [shape = 's32[2]{0}', space=sflag, size = 0x8, scoped, tag = 'scoped memory for tpu_custom_call.1']
    #allocation4 [shape = 's32[2]{0}', space=sflag, size = 0x8, scoped, tag = 'scoped memory for tpu_custom_call.1']
    #allocation5 [shape = 'u8[131072]{0}', space=vmem, size = 0x20000, scoped, tag = 'output window, operand 0']
    %11 = vsyncpa [#allocation3], 0
    %s12 = scalar_lea.sflag [#allocation3], 1
    %13 = vsyncpa %s12, 0
    %14 = vsyncpa [#allocation4], 0
    %s15 = scalar_lea.sflag [#allocation4], 1
    %16 = vsyncpa %s15, 0
    loop: start=0, step=1, limit=6
    $region2: #{tpu_custom_call.1} parent=1 // loop_pre_header
      _
    $region3: #{tpu_custom_call.1} parent=1 // loop_header
      %s18 = sphi 0, %s22
      %p19 = scmp.ge.s32.totalorder %s18, 6
      %s25 = sphi 0, %s37
      %s26 = sphi 0, %s33
      %s27 = sphi 0, %s25
      %s28 = sphi 0, %s26
      %s29 = sphi 0, %s27
      %s30 = sphi 0, %s28
      %s42 = sphi 0, %s44
      %s45 = sphi 0, %s42
      %s46 = sphi 0, %s45
      %s62 = sphi 0, %s46
      %s68 = sphi 0, %s70
      %s71 = sphi 0, %s68
      %s72 = sphi 0, %s71
      %s88 = sphi 0, %s72
      %s92 = sphi 0, %s92
      %s94 = sphi 0, %s92
      %s95 = sphi 0, %s94
      %s109 = sphi 0, %s95
      %s113 = sphi 0, %s113
      %s115 = sphi 0, %s113
      %s116 = sphi 0, %s115
      %s130 = sphi 0, %s116
      %s134 = sphi 0, %s134
      %s136 = sphi 0, %s134
      %s137 = sphi 0, %s136
      %s151 = sphi 0, %s137
      %s155 = sphi 0, %s155
      %s157 = sphi 0, %s155
      %s158 = sphi 0, %s157
      %s172 = sphi 0, %s158
      %s180 = sphi 0, %s182
      %s183 = sphi 0, %s180
      %s184 = sphi 0, %s183
      %s200 = sphi 0, %s184
    $region4: #{tpu_custom_call.1} parent=1 // loop_header_branch
      %21 = sbr.rel (%p19) target = $region8
    $region5: #{tpu_custom_call.1} parent=1 // loop_body
      %s23 = ssub.s32 %s18, 1
      %s24 = ssub.s32 %s18, 2
      %s31 = sadd.s32 1, %s26
      %p32 = scmp.ge.s32.totalorder %s31, 2
      %s33 = scalar_select %p32, 0, %s31
      %s34 = sadd.s32 1, %s25
      %s35 = scalar_select %p32, %s34, %s25
      %p36 = scmp.ge.s32.totalorder %s35, 2
      %s37 = scalar_select %p36, 0, %s35
      %s38 = ssub.s32 %s25, %s37
      %s39 = ssub.s32 %s26, %s33
      %s40 = sor.u32 %s38, %s39
      %p41 = scmp.eq.s32.totalorder %s40, 0
      %s43 = sadd.s32 %s42, 1
      %s44 = scalar_select %p41, %s42, %s43
      %p47 = pneg %p41
      %p48 = scmp.eq.s32.totalorder %s18, 3
      %p49 = por %p47, %p48
      %p50 = scmp.ne.s32.totalorder %s42, %s45
      %p51 = scmp.eq.s32.totalorder %s18, 0
      %p52 = por %p50, %p51
      %p53 = scmp.ne.s32.totalorder %s42, %s45
      %p54 = scmp.eq.s32.totalorder %s23, 3
      %p55 = por %p53, %p54
      %p56 = scmp.ne.s32.totalorder %s45, %s46
      %p57 = scmp.eq.s32.totalorder %s23, 0
      %p58 = por %p56, %p57
      %p59 = scmp.ne.s32.totalorder %s45, %s46
      %p60 = scmp.eq.s32.totalorder %s24, 3
      %p61 = por %p59, %p60
      %p63 = scmp.ne.s32.totalorder %s46, %s62
      %p64 = scmp.eq.s32.totalorder %s24, 0
      %p65 = por %p63, %p64
      %s66 = ssub.s32 %s25, %s37
      %p67 = scmp.eq.s32.totalorder %s66, 0
      %s69 = sadd.s32 %s68, 1
      %s70 = scalar_select %p67, %s68, %s69
      %p73 = pneg %p67
      %p74 = scmp.eq.s32.totalorder %s18, 3
      %p75 = por %p73, %p74
      %p76 = scmp.ne.s32.totalorder %s68, %s71
      %p77 = scmp.eq.s32.totalorder %s18, 0
      %p78 = por %p76, %p77
      %p79 = scmp.ne.s32.totalorder %s68, %s71
      %p80 = scmp.eq.s32.totalorder %s23, 3
      %p81 = por %p79, %p80
      %p82 = scmp.ne.s32.totalorder %s71, %s72
      %p83 = scmp.eq.s32.totalorder %s23, 0
      %p84 = por %p82, %p83
      %p85 = scmp.ne.s32.totalorder %s71, %s72
      %p86 = scmp.eq.s32.totalorder %s24, 3
      %p87 = por %p85, %p86
      %p89 = scmp.ne.s32.totalorder %s72, %s88
      %p90 = scmp.eq.s32.totalorder %s24, 0
      %p91 = por %p89, %p90
      %s93 = sadd.s32 %s92, 1
      %p96 = scmp.eq.s32.totalorder %s18, 3
      %p97 = scmp.ne.s32.totalorder %s92, %s94
      %p98 = scmp.eq.s32.totalorder %s18, 0
      %p99 = por %p97, %p98
      %p100 = scmp.ne.s32.totalorder %s92, %s94
      %p101 = scmp.eq.s32.totalorder %s23, 3
      %p102 = por %p100, %p101
      %p103 = scmp.ne.s32.totalorder %s94, %s95
      %p104 = scmp.eq.s32.totalorder %s23, 0
      %p105 = por %p103, %p104
      %p106 = scmp.ne.s32.totalorder %s94, %s95
      %p107 = scmp.eq.s32.totalorder %s24, 3
      %p108 = por %p106, %p107
      %p110 = scmp.ne.s32.totalorder %s95, %s109
      %p111 = scmp.eq.s32.totalorder %s24, 0
      %p112 = por %p110, %p111
      %s114 = sadd.s32 %s113, 1
      %p117 = scmp.eq.s32.totalorder %s18, 3
      %p118 = scmp.ne.s32.totalorder %s113, %s115
      %p119 = scmp.eq.s32.totalorder %s18, 0
      %p120 = por %p118, %p119
      %p121 = scmp.ne.s32.totalorder %s113, %s115
      %p122 = scmp.eq.s32.totalorder %s23, 3
      %p123 = por %p121, %p122
      %p124 = scmp.ne.s32.totalorder %s115, %s116
      %p125 = scmp.eq.s32.totalorder %s23, 0
      %p126 = por %p124, %p125
      %p127 = scmp.ne.s32.totalorder %s115, %s116
      %p128 = scmp.eq.s32.totalorder %s24, 3
      %p129 = por %p127, %p128
      %p131 = scmp.ne.s32.totalorder %s116, %s130
      %p132 = scmp.eq.s32.totalorder %s24, 0
      %p133 = por %p131, %p132
      %s135 = sadd.s32 %s134, 1
      %p138 = scmp.eq.s32.totalorder %s18, 3
      %p139 = scmp.ne.s32.totalorder %s134, %s136
      %p140 = scmp.eq.s32.totalorder %s18, 0
      %p141 = por %p139, %p140
      %p142 = scmp.ne.s32.totalorder %s134, %s136
      %p143 = scmp.eq.s32.totalorder %s23, 3
      %p144 = por %p142, %p143
      %p145 = scmp.ne.s32.totalorder %s136, %s137
      %p146 = scmp.eq.s32.totalorder %s23, 0
      %p147 = por %p145, %p146
      %p148 = scmp.ne.s32.totalorder %s136, %s137
      %p149 = scmp.eq.s32.totalorder %s24, 3
      %p150 = por %p148, %p149
      %p152 = scmp.ne.s32.totalorder %s137, %s151
      %p153 = scmp.eq.s32.totalorder %s24, 0
      %p154 = por %p152, %p153
      %s156 = sadd.s32 %s155, 1
      %p159 = scmp.eq.s32.totalorder %s18, 3
      %p160 = scmp.ne.s32.totalorder %s155, %s157
      %p161 = scmp.eq.s32.totalorder %s18, 0
      %p162 = por %p160, %p161
      %p163 = scmp.ne.s32.totalorder %s155, %s157
      %p164 = scmp.eq.s32.totalorder %s23, 3
      %p165 = por %p163, %p164
      %p166 = scmp.ne.s32.totalorder %s157, %s158
      %p167 = scmp.eq.s32.totalorder %s23, 0
      %p168 = por %p166, %p167
      %p169 = scmp.ne.s32.totalorder %s157, %s158
      %p170 = scmp.eq.s32.totalorder %s24, 3
      %p171 = por %p169, %p170
      %p173 = scmp.ne.s32.totalorder %s158, %s172
      %p174 = scmp.eq.s32.totalorder %s24, 0
      %p175 = por %p173, %p174
      %s176 = ssub.s32 %s25, %s37
      %s177 = ssub.s32 %s26, %s33
      %s178 = sor.u32 %s176, %s177
      %p179 = scmp.eq.s32.totalorder %s178, 0
      %s181 = sadd.s32 %s180, 1
      %s182 = scalar_select %p179, %s180, %s181
      %p185 = pneg %p179
      %p186 = scmp.eq.s32.totalorder %s18, 3
      %p187 = por %p185, %p186
      %p188 = scmp.ne.s32.totalorder %s180, %s183
      %p189 = scmp.eq.s32.totalorder %s18, 0
      %p190 = por %p188, %p189
      %p191 = scmp.ne.s32.totalorder %s180, %s183
      %p192 = scmp.eq.s32.totalorder %s23, 3
      %p193 = por %p191, %p192
      %p194 = scmp.ne.s32.totalorder %s183, %s184
      %p195 = scmp.eq.s32.totalorder %s23, 0
      %p196 = por %p194, %p195
      %p197 = scmp.ne.s32.totalorder %s183, %s184
      %p198 = scmp.eq.s32.totalorder %s24, 3
      %p199 = por %p197, %p198
      %p201 = scmp.ne.s32.totalorder %s184, %s200
      %p202 = scmp.eq.s32.totalorder %s24, 0
      %p203 = por %p201, %p202
      %p204 = scmp.le.s32.totalorder 1, %s18
      %p205 = scmp.lt.s32.totalorder %s18, 5
      %p206 = pnand %p204, %p205
      %p207 = pneg %p206
      // Predicated region
      $region9: #{tpu_custom_call.1} parent=5 // pred_check
        _
      $region10: #{tpu_custom_call.1} parent=5 // pred_check_branch
        %209 = sbr.rel (%p206) target = $region12
      $region11: #{tpu_custom_call.1} parent=5 // pred_region
        %s210 = ssub.s32 %s18, 1
        // Predicated region
        $region13: #{tpu_custom_call.1} parent=11 // pred_check
          %p211 = pneg %p105
        $region14: #{tpu_custom_call.1} parent=11 // pred_check_branch
          %213 = sbr.rel (%p211) target = $region16
        $region15: #{tpu_custom_call.1} parent=11 // pred_region
          _
        $region16: #{tpu_custom_call.1} parent=11 // pred_fallthru
          _
        // Predicated region
        $region17: #{tpu_custom_call.1} parent=11 // pred_check
          %p214 = pneg %p126
        $region18: #{tpu_custom_call.1} parent=11 // pred_check_branch
          %216 = sbr.rel (%p214) target = $region20
        $region19: #{tpu_custom_call.1} parent=11 // pred_region
          _
        $region20: #{tpu_custom_call.1} parent=11 // pred_fallthru
          _
        // Predicated region
        $region21: #{tpu_custom_call.1} parent=11 // pred_check
          %p217 = pneg %p147
        $region22: #{tpu_custom_call.1} parent=11 // pred_check_branch
          %219 = sbr.rel (%p217) target = $region24
        $region23: #{tpu_custom_call.1} parent=11 // pred_region
          _
        $region24: #{tpu_custom_call.1} parent=11 // pred_fallthru
          _
        // Predicated region
        $region25: #{tpu_custom_call.1} parent=11 // pred_check
          %p220 = pneg %p168
        $region26: #{tpu_custom_call.1} parent=11 // pred_check_branch
          %222 = sbr.rel (%p220) target = $region28
        $region27: #{tpu_custom_call.1} parent=11 // pred_region
          _
        $region28: #{tpu_custom_call.1} parent=11 // pred_fallthru
          _
      $region12: #{tpu_custom_call.1} parent=5 // pred_fallthru
        _
      %p223 = scmp.lt.s32.totalorder %s18, 4
      // Predicated region
      $region29: #{tpu_custom_call.1} parent=5 // pred_check
        %p224 = pneg %p223
      $region30: #{tpu_custom_call.1} parent=5 // pred_check_branch
        %226 = sbr.rel (%p224) target = $region32
      $region31: #{tpu_custom_call.1} parent=5 // pred_region
        // Predicated region
        $region33: #{tpu_custom_call.1} parent=31 // pred_check
          %p227 = pneg %p52
        $region34: #{tpu_custom_call.1} parent=31 // pred_check_branch
          %229 = sbr.rel (%p227) target = $region36
        $region35: #{tpu_custom_call.1} parent=31 // pred_region
          %s230 = sand.u32 %s42, 1
          %s231 = scalar_lea.sflag [#allocation3], %s230
          %s232 = sand.u32 %s42, 1
          %s233 = smul.addr %s232, 128
          %s234 = scalar_lea.vmem [#allocation2], %s233
          %s235 = smul.u32 16, %s26
          %s237 = ssub.s32 2048, 2048
          %238 = vsyncadd %s231, %s237
          %s239 = smul.addr %s25, 32
          %s240 = sadd.s32 %s235, %s239
          %s241 = smul.addr %s240, 128
          %s242 = scalar_lea.hbm %s0, %s241
          %s243 = sshll.u32 %s234, 4
          %s244 = int_to_ptr.vmem [resolvable:$true] %s243
          %249 = dma.hbm_to_vmem [thread:$0]  %s242, 2048, %s244, %s231, 128, 128, 8
        $region36: #{tpu_custom_call.1} parent=31 // pred_fallthru
          _
        // Predicated region
        $region37: #{tpu_custom_call.1} parent=31 // pred_check
          %p250 = pneg %p78
        $region38: #{tpu_custom_call.1} parent=31 // pred_check_branch
          %252 = sbr.rel (%p250) target = $region40
        $region39: #{tpu_custom_call.1} parent=31 // pred_region
          %p253 = scmp.lt.s32.totalorder %s25, 1
          %s254 = scalar_select %p253, %s25, 1
          %s255 = scalar_lea.vmem %s1, %s254
        $region40: #{tpu_custom_call.1} parent=31 // pred_fallthru
          _
      $region32: #{tpu_custom_call.1} parent=5 // pred_fallthru
        _
      %p256 = scmp.le.s32.totalorder 1, %s18
      %p257 = scmp.lt.s32.totalorder %s18, 5
      %p258 = pnand %p256, %p257
      %p259 = pneg %p258
      // Predicated region
      $region41: #{tpu_custom_call.1} parent=5 // pred_check
        _
      $region42: #{tpu_custom_call.1} parent=5 // pred_check_branch
        %261 = sbr.rel (%p258) target = $region44
      $region43: #{tpu_custom_call.1} parent=5 // pred_region
        %s262 = ssub.s32 %s18, 1
        %s263 = sand.u32 %s45, 1
        %s264 = scalar_lea.sflag [#allocation3], %s263
        %s265 = sand.u32 %s45, 1
        %s266 = smul.addr %s265, 128
        %s267 = scalar_lea.vmem [#allocation2], %s266
        // Predicated region
        $region45: #{tpu_custom_call.1} parent=43 // pred_check
          %p268 = pneg %p58
        $region46: #{tpu_custom_call.1} parent=43 // pred_check_branch
          %270 = sbr.rel (%p268) target = $region48
        $region47: #{tpu_custom_call.1} parent=43 // pred_region
          %271 = dma.done %s264, 2048
        $region48: #{tpu_custom_call.1} parent=43 // pred_fallthru
          _
        %s272 = sand.u32 %s45, 1
        %s273 = scalar_lea.sflag [#allocation3], %s272
        %s274 = sand.u32 %s45, 1
        %s275 = smul.addr %s274, 128
        %s276 = scalar_lea.vmem [#allocation2], %s275
        %p277 = pneg %p58
        %p278 = pneg %p55
        %p279 = scmp.lt.s32.totalorder %s27, 1
        %s280 = scalar_select %p279, %s27, 1
        %s281 = scalar_lea.vmem %s1, %s280
        %p282 = pneg %p84
        %p283 = pneg %p81
        %p284 = pneg %p105
        %p285 = pneg %p102
        %p286 = pneg %p126
        %p287 = pneg %p123
        %p288 = pneg %p147
        %p289 = pneg %p144
        %p290 = pneg %p168
        %p291 = pneg %p165
        %p292 = pneg %p196
        %p293 = pneg %p193
        %s294 = sand.u32 %s183, 1
        %s295 = scalar_lea.sflag [#allocation4], %s294
        %s296 = sand.u32 %s183, 1
        %s297 = smul.addr %s296, 128
        %s298 = scalar_lea.vmem [#allocation5], %s297
        %s299 = smul.u32 16, %s28
        %p300 = scmp.lt.s32.totalorder %s27, 1
        %s301 = scalar_select %p300, %s27, 1
        %s302 = scalar_lea.vmem %s1, %s301
        %s303 = smul.u32 16, %s28
        %v304 = vld [vmem:[%s267] sm:$0xff]
        %v305 = vld [vmem:[%s267 + $0x8] sm:$0xff]
        %v306 = vld [vmem:[%s267 + $0x10] sm:$0xff]
        %v307 = vld [vmem:[%s267 + $0x18] sm:$0xff]
        %v308 = vld [vmem:[%s267 + $0x20] sm:$0xff]
        %v309 = vld [vmem:[%s267 + $0x28] sm:$0xff]
        %v310 = vld [vmem:[%s267 + $0x30] sm:$0xff]
        %v311 = vld [vmem:[%s267 + $0x38] sm:$0xff]
        %v312 = vld [vmem:[%s267 + $0x40] sm:$0xff]
        %v313 = vld [vmem:[%s267 + $0x48] sm:$0xff]
        %v314 = vld [vmem:[%s267 + $0x50] sm:$0xff]
        %v315 = vld [vmem:[%s267 + $0x58] sm:$0xff]
        %v316 = vld [vmem:[%s267 + $0x60] sm:$0xff]
        %v317 = vld [vmem:[%s267 + $0x68] sm:$0xff]
        %v318 = vld [vmem:[%s267 + $0x70] sm:$0xff]
        %v319 = vld [vmem:[%s267 + $0x78] sm:$0xff]
        %v320 = vld [vmem:[%s2] sm:$0xff]
        %v321 = vld [vmem:[%s2 + $0x8] sm:$0xff]
        %v322 = vld [vmem:[%s2 + $0x10] sm:$0xff]
        %v323 = vld [vmem:[%s2 + $0x18] sm:$0xff]
        %v324 = vld [vmem:[%s2 + $0x20] sm:$0xff]
        %v325 = vld [vmem:[%s2 + $0x28] sm:$0xff]
        %v326 = vld [vmem:[%s2 + $0x30] sm:$0xff]
        %v327 = vld [vmem:[%s2 + $0x38] sm:$0xff]
        %v328 = vld [vmem:[%s2 + $0x40] sm:$0xff]
        %v329 = vld [vmem:[%s2 + $0x48] sm:$0xff]
        %v330 = vld [vmem:[%s2 + $0x50] sm:$0xff]
        %v331 = vld [vmem:[%s2 + $0x58] sm:$0xff]
        %v332 = vld [vmem:[%s2 + $0x60] sm:$0xff]
        %v333 = vld [vmem:[%s2 + $0x68] sm:$0xff]
        %v334 = vld [vmem:[%s2 + $0x70] sm:$0xff]
        %v335 = vld [vmem:[%s2 + $0x78] sm:$0xff]
        %v336 = vld [vmem:[%s3] sm:$0x1]
        %v338 = vlaneseq
        %v339 = vshrl.u32 %v338, 7
        %v340 = vsub.s32 0, %v339
        %v341 = vrot.slane %v336, %v340
        %343 = vmatprep.subr.mxu0 0.0
        %344 = vmatpush1.msra.mxu0 %v335
        %345 = vmatprep.subr.mxu0 0.0
        %346 = vmatpush1.msra.mxu0 %v334
        %347 = vmatprep.subr.mxu0 0.0
        %348 = vmatpush1.msra.mxu0 %v333
        %349 = vmatprep.subr.mxu0 0.0
        %350 = vmatpush1.msra.mxu0 %v332
        %351 = vmatprep.subr.mxu0 0.0
        %352 = vmatpush1.msra.mxu0 %v331
        %353 = vmatprep.subr.mxu0 0.0
        %354 = vmatpush1.msra.mxu0 %v330
        %355 = vmatprep.subr.mxu0 0.0
        %356 = vmatpush1.msra.mxu0 %v329
        %357 = vmatprep.subr.mxu0 0.0
        %358 = vmatpush1.msra.mxu0 %v328
        %359 = vmatprep.subr.mxu0 0.0
        %360 = vmatpush1.msra.mxu0 %v327
        %361 = vmatprep.subr.mxu0 0.0
        %362 = vmatpush1.msra.mxu0 %v326
        %363 = vmatprep.subr.mxu0 0.0
        %364 = vmatpush1.msra.mxu0 %v325
        %365 = vmatprep.subr.mxu0 0.0
        %366 = vmatpush1.msra.mxu0 %v324
        %367 = vmatprep.subr.mxu0 0.0
        %368 = vmatpush1.msra.mxu0 %v323
        %369 = vmatprep.subr.mxu0 0.0
        %370 = vmatpush1.msra.mxu0 %v322
        %371 = vmatprep.subr.mxu0 0.0
        %372 = vmatpush1.msra.mxu0 %v321
        %373 = vmatprep.subr.mxu0 0.0
        %374 = vmatpush1.msra.mxu0 %v320
        %375 = vmatprep.subr.mxu0 0.0
        %376 = vmatpush2.msra.mxu0 0.0
        %377 = vmatprep.subr.mxu0 0.0
        %378 = vmatpush2.msra.mxu0 0.0
        %379 = vmatprep.subr.mxu0 0.0
        %380 = vmatpush2.msra.mxu0 0.0
        %381 = vmatprep.subr.mxu0 0.0
        %382 = vmatpush2.msra.mxu0 0.0
        %383 = vmatprep.subr.mxu0 0.0
        %384 = vmatpush2.msra.mxu0 0.0
        %385 = vmatprep.subr.mxu0 0.0
        %386 = vmatpush2.msra.mxu0 0.0
        %387 = vmatprep.subr.mxu0 0.0
        %388 = vmatpush2.msra.mxu0 0.0
        %389 = vmatprep.subr.mxu0 0.0
        %390 = vmatpush2.msra.mxu0 0.0
        %391 = vmatprep.subr.mxu0 0.0
        %392 = vmatpush2.msra.mxu0 0.0
        %393 = vmatprep.subr.mxu0 0.0
        %394 = vmatpush2.msra.mxu0 0.0
        %395 = vmatprep.subr.mxu0 0.0
        %396 = vmatpush2.msra.mxu0 0.0
        %397 = vmatprep.subr.mxu0 0.0
        %398 = vmatpush2.msra.mxu0 0.0
        %399 = vmatprep.subr.mxu0 0.0
        %400 = vmatpush2.msra.mxu0 0.0
        %401 = vmatprep.subr.mxu0 0.0
        %402 = vmatpush2.msra.mxu0 0.0
        %403 = vmatprep.subr.mxu0 0.0
        %404 = vmatpush2.msra.mxu0 0.0
        %405 = vmatprep.subr.mxu0 0.0
        %406 = vmatpush2.msra.mxu0 0.0
        %407 = vmatprep.mubr.f32.mxu0 0.0
        %408 = vmatmul.mubr.f32.gmra.mxu0 %v304
        %v409 = vpop.f32.mrf.mxu0
        %v410 = vadd.f32 %v341, %v409
        %v411 = vpop.f32.mrf.mxu0
        %412 = vmatprep.mubr.f32.mxu0 0.0
        %413 = vmatmul.mubr.f32.gmra.mxu0 %v305
        %v414 = vpop.f32.mrf.mxu0
        %v415 = vadd.f32 %v341, %v414
        %v416 = vpop.f32.mrf.mxu0
        %417 = vmatprep.mubr.f32.mxu0 0.0
        %418 = vmatmul.mubr.f32.gmra.mxu0 %v306
        %v419 = vpop.f32.mrf.mxu0
        %v420 = vadd.f32 %v341, %v419
        %v421 = vpop.f32.mrf.mxu0
        %422 = vmatprep.mubr.f32.mxu0 0.0
        %423 = vmatmul.mubr.f32.gmra.mxu0 %v307
        %v424 = vpop.f32.mrf.mxu0
        %v425 = vadd.f32 %v341, %v424
        %v426 = vpop.f32.mrf.mxu0
        %427 = vmatprep.mubr.f32.mxu0 0.0
        %428 = vmatmul.mubr.f32.gmra.mxu0 %v308
        %v429 = vpop.f32.mrf.mxu0
        %v430 = vadd.f32 %v341, %v429
        %v431 = vpop.f32.mrf.mxu0
        %432 = vmatprep.mubr.f32.mxu0 0.0
        %433 = vmatmul.mubr.f32.gmra.mxu0 %v309
        %v434 = vpop.f32.mrf.mxu0
        %v435 = vadd.f32 %v341, %v434
        %v436 = vpop.f32.mrf.mxu0
        %437 = vmatprep.mubr.f32.mxu0 0.0
        %438 = vmatmul.mubr.f32.gmra.mxu0 %v310
        %v439 = vpop.f32.mrf.mxu0
        %v440 = vadd.f32 %v341, %v439
        %v441 = vpop.f32.mrf.mxu0
        %442 = vmatprep.mubr.f32.mxu0 0.0
        %443 = vmatmul.mubr.f32.gmra.mxu0 %v311
        %v444 = vpop.f32.mrf.mxu0
        %v445 = vadd.f32 %v341, %v444
        %v446 = vpop.f32.mrf.mxu0
        %447 = vmatprep.mubr.f32.mxu0 0.0
        %448 = vmatmul.mubr.f32.gmra.mxu0 %v312
        %v449 = vpop.f32.mrf.mxu0
        %v450 = vadd.f32 %v341, %v449
        %v451 = vpop.f32.mrf.mxu0
        %452 = vmatprep.mubr.f32.mxu0 0.0
        %453 = vmatmul.mubr.f32.gmra.mxu0 %v313
        %v454 = vpop.f32.mrf.mxu0
        %v455 = vadd.f32 %v341, %v454
        %v456 = vpop.f32.mrf.mxu0
        %457 = vmatprep.mubr.f32.mxu0 0.0
        %458 = vmatmul.mubr.f32.gmra.mxu0 %v314
        %v459 = vpop.f32.mrf.mxu0
        %v460 = vadd.f32 %v341, %v459
        %v461 = vpop.f32.mrf.mxu0
        %462 = vmatprep.mubr.f32.mxu0 0.0
        %463 = vmatmul.mubr.f32.gmra.mxu0 %v315
        %v464 = vpop.f32.mrf.mxu0
        %v465 = vadd.f32 %v341, %v464
        %v466 = vpop.f32.mrf.mxu0
        %467 = vmatprep.mubr.f32.mxu0 0.0
        %468 = vmatmul.mubr.f32.gmra.mxu0 %v316
        %v469 = vpop.f32.mrf.mxu0
        %v470 = vadd.f32 %v341, %v469
        %v471 = vpop.f32.mrf.mxu0
        %472 = vmatprep.mubr.f32.mxu0 0.0
        %473 = vmatmul.mubr.f32.gmra.mxu0 %v317
        %v474 = vpop.f32.mrf.mxu0
        %v475 = vadd.f32 %v341, %v474
        %v476 = vpop.f32.mrf.mxu0
        %477 = vmatprep.mubr.f32.mxu0 0.0
        %478 = vmatmul.mubr.f32.gmra.mxu0 %v318
        %v479 = vpop.f32.mrf.mxu0
        %v480 = vadd.f32 %v341, %v479
        %v481 = vpop.f32.mrf.mxu0
        %482 = vmatprep.mubr.f32.mxu0 0.0
        %483 = vmatmul.mubr.f32.gmra.mxu0 %v319
        %v484 = vpop.f32.mrf.mxu0
        %v485 = vadd.f32 %v341, %v484
        %v486 = vpop.f32.mrf.mxu0
        %487 = vdwg.mxu0
        %v488 = vmax.f32 %v410, 0.0
        %v489 = vmax.f32 %v415, 0.0
        %v490 = vmax.f32 %v420, 0.0
        %v491 = vmax.f32 %v425, 0.0
        %v492 = vmax.f32 %v430, 0.0
        %v493 = vmax.f32 %v435, 0.0
        %v494 = vmax.f32 %v440, 0.0
        %v495 = vmax.f32 %v445, 0.0
        %v496 = vmax.f32 %v450, 0.0
        %v497 = vmax.f32 %v455, 0.0
        %v498 = vmax.f32 %v460, 0.0
        %v499 = vmax.f32 %v465, 0.0
        %v500 = vmax.f32 %v470, 0.0
        %v501 = vmax.f32 %v475, 0.0
        %v502 = vmax.f32 %v480, 0.0
        %v503 = vmax.f32 %v485, 0.0
        %v504 = vld [vmem:[%s4] sm:$0xff]
        %v505 = vld [vmem:[%s4 + $0x8] sm:$0xff]
        %v506 = vld [vmem:[%s5] sm:$0x1]
        %v508 = vlaneseq
        %v509 = vshrl.u32 %v508, 7
        %v510 = vsub.s32 0, %v509
        %v511 = vrot.slane %v506, %v510
        %vm513 = vcmask 130048
        %v515 = vsel %vm513, %v488, 0
        %v518 = vsel %vm513, %v489, 0
        %v521 = vsel %vm513, %v490, 0
        %v524 = vsel %vm513, %v491, 0
        %v527 = vsel %vm513, %v492, 0
        %v530 = vsel %vm513, %v493, 0
        %v533 = vsel %vm513, %v494, 0
        %v536 = vsel %vm513, %v495, 0
        %v539 = vsel %vm513, %v496, 0
        %v542 = vsel %vm513, %v497, 0
        %v545 = vsel %vm513, %v498, 0
        %v548 = vsel %vm513, %v499, 0
        %v551 = vsel %vm513, %v500, 0
        %v554 = vsel %vm513, %v501, 0
        %v557 = vsel %vm513, %v502, 0
        %v560 = vsel %vm513, %v503, 0
        %562 = vmatprep.subr.mxu0 0.0
        %563 = vmatpush1.msra.mxu0 0.0
        %564 = vmatprep.subr.mxu0 0.0
        %565 = vmatpush1.msra.mxu0 0.0
        %566 = vmatprep.subr.mxu0 0.0
        %567 = vmatpush1.msra.mxu0 0.0
        %568 = vmatprep.subr.mxu0 0.0
        %569 = vmatpush1.msra.mxu0 0.0
        %570 = vmatprep.subr.mxu0 0.0
        %571 = vmatpush1.msra.mxu0 0.0
        %572 = vmatprep.subr.mxu0 0.0
        %573 = vmatpush1.msra.mxu0 0.0
        %574 = vmatprep.subr.mxu0 0.0
        %575 = vmatpush1.msra.mxu0 0.0
        %576 = vmatprep.subr.mxu0 0.0
        %577 = vmatpush1.msra.mxu0 0.0
        %578 = vmatprep.subr.mxu0 0.0
        %579 = vmatpush1.msra.mxu0 0.0
        %580 = vmatprep.subr.mxu0 0.0
        %581 = vmatpush1.msra.mxu0 0.0
        %582 = vmatprep.subr.mxu0 0.0
        %583 = vmatpush1.msra.mxu0 0.0
        %584 = vmatprep.subr.mxu0 0.0
        %585 = vmatpush1.msra.mxu0 0.0
        %586 = vmatprep.subr.mxu0 0.0
        %587 = vmatpush1.msra.mxu0 0.0
        %588 = vmatprep.subr.mxu0 0.0
        %589 = vmatpush1.msra.mxu0 0.0
        %590 = vmatprep.subr.mxu0 0.0
        %591 = vmatpush1.msra.mxu0 %v505
        %592 = vmatprep.subr.mxu0 0.0
        %593 = vmatpush1.msra.mxu0 %v504
        %594 = vmatprep.subr.mxu0 0.0
        %595 = vmatpush2.msra.mxu0 0.0
        %596 = vmatprep.subr.mxu0 0.0
        %597 = vmatpush2.msra.mxu0 0.0
        %598 = vmatprep.subr.mxu0 0.0
        %599 = vmatpush2.msra.mxu0 0.0
        %600 = vmatprep.subr.mxu0 0.0
        %601 = vmatpush2.msra.mxu0 0.0
        %602 = vmatprep.subr.mxu0 0.0
        %603 = vmatpush2.msra.mxu0 0.0
        %604 = vmatprep.subr.mxu0 0.0
        %605 = vmatpush2.msra.mxu0 0.0
        %606 = vmatprep.subr.mxu0 0.0
        %607 = vmatpush2.msra.mxu0 0.0
        %608 = vmatprep.subr.mxu0 0.0
        %609 = vmatpush2.msra.mxu0 0.0
        %610 = vmatprep.subr.mxu0 0.0
        %611 = vmatpush2.msra.mxu0 0.0
        %612 = vmatprep.subr.mxu0 0.0
        %613 = vmatpush2.msra.mxu0 0.0
        %614 = vmatprep.subr.mxu0 0.0
        %615 = vmatpush2.msra.mxu0 0.0
        %616 = vmatprep.subr.mxu0 0.0
        %617 = vmatpush2.msra.mxu0 0.0
        %618 = vmatprep.subr.mxu0 0.0
        %619 = vmatpush2.msra.mxu0 0.0
        %620 = vmatprep.subr.mxu0 0.0
        %621 = vmatpush2.msra.mxu0 0.0
        %622 = vmatprep.subr.mxu0 0.0
        %623 = vmatpush2.msra.mxu0 0.0
        %624 = vmatprep.subr.mxu0 0.0
        %625 = vmatpush2.msra.mxu0 0.0
        %626 = vmatprep.mubr.f32.mxu0 0.0
        %627 = vmatmul.mubr.f32.gmra.mxu0 %v515
        %v628 = vpop.f32.mrf.mxu0
        %v629 = vadd.f32 %v511, %v628
        %v630 = vpop.f32.mrf.mxu0
        %631 = vmatprep.mubr.f32.mxu0 0.0
        %632 = vmatmul.mubr.f32.gmra.mxu0 %v518
        %v633 = vpop.f32.mrf.mxu0
        %v634 = vadd.f32 %v511, %v633
        %v635 = vpop.f32.mrf.mxu0
        %636 = vmatprep.mubr.f32.mxu0 0.0
        %637 = vmatmul.mubr.f32.gmra.mxu0 %v521
        %v638 = vpop.f32.mrf.mxu0
        %v639 = vadd.f32 %v511, %v638
        %v640 = vpop.f32.mrf.mxu0
        %641 = vmatprep.mubr.f32.mxu0 0.0
        %642 = vmatmul.mubr.f32.gmra.mxu0 %v524
        %v643 = vpop.f32.mrf.mxu0
        %v644 = vadd.f32 %v511, %v643
        %v645 = vpop.f32.mrf.mxu0
        %646 = vmatprep.mubr.f32.mxu0 0.0
        %647 = vmatmul.mubr.f32.gmra.mxu0 %v527
        %v648 = vpop.f32.mrf.mxu0
        %v649 = vadd.f32 %v511, %v648
        %v650 = vpop.f32.mrf.mxu0
        %651 = vmatprep.mubr.f32.mxu0 0.0
        %652 = vmatmul.mubr.f32.gmra.mxu0 %v530
        %v653 = vpop.f32.mrf.mxu0
        %v654 = vadd.f32 %v511, %v653
        %v655 = vpop.f32.mrf.mxu0
        %656 = vmatprep.mubr.f32.mxu0 0.0
        %657 = vmatmul.mubr.f32.gmra.mxu0 %v533
        %v658 = vpop.f32.mrf.mxu0
        %v659 = vadd.f32 %v511, %v658
        %v660 = vpop.f32.mrf.mxu0
        %661 = vmatprep.mubr.f32.mxu0 0.0
        %662 = vmatmul.mubr.f32.gmra.mxu0 %v536
        %v663 = vpop.f32.mrf.mxu0
        %v664 = vadd.f32 %v511, %v663
        %v665 = vpop.f32.mrf.mxu0
        %666 = vmatprep.mubr.f32.mxu0 0.0
        %667 = vmatmul.mubr.f32.gmra.mxu0 %v539
        %v668 = vpop.f32.mrf.mxu0
        %v669 = vadd.f32 %v511, %v668
        %v670 = vpop.f32.mrf.mxu0
        %671 = vmatprep.mubr.f32.mxu0 0.0
        %672 = vmatmul.mubr.f32.gmra.mxu0 %v542
        %v673 = vpop.f32.mrf.mxu0
        %v674 = vadd.f32 %v511, %v673
        %v675 = vpop.f32.mrf.mxu0
        %676 = vmatprep.mubr.f32.mxu0 0.0
        %677 = vmatmul.mubr.f32.gmra.mxu0 %v545
        %v678 = vpop.f32.mrf.mxu0
        %v679 = vadd.f32 %v511, %v678
        %v680 = vpop.f32.mrf.mxu0
        %681 = vmatprep.mubr.f32.mxu0 0.0
        %682 = vmatmul.mubr.f32.gmra.mxu0 %v548
        %v683 = vpop.f32.mrf.mxu0
        %v684 = vadd.f32 %v511, %v683
        %v685 = vpop.f32.mrf.mxu0
        %686 = vmatprep.mubr.f32.mxu0 0.0
        %687 = vmatmul.mubr.f32.gmra.mxu0 %v551
        %v688 = vpop.f32.mrf.mxu0
        %v689 = vadd.f32 %v511, %v688
        %v690 = vpop.f32.mrf.mxu0
        %691 = vmatprep.mubr.f32.mxu0 0.0
        %692 = vmatmul.mubr.f32.gmra.mxu0 %v554
        %v693 = vpop.f32.mrf.mxu0
        %v694 = vadd.f32 %v511, %v693
        %v695 = vpop.f32.mrf.mxu0
        %696 = vmatprep.mubr.f32.mxu0 0.0
        %697 = vmatmul.mubr.f32.gmra.mxu0 %v557
        %v698 = vpop.f32.mrf.mxu0
        %v699 = vadd.f32 %v511, %v698
        %v700 = vpop.f32.mrf.mxu0
        %701 = vmatprep.mubr.f32.mxu0 0.0
        %702 = vmatmul.mubr.f32.gmra.mxu0 %v560
        %v703 = vpop.f32.mrf.mxu0
        %v704 = vadd.f32 %v511, %v703
        %v705 = vpop.f32.mrf.mxu0
        %706 = vdwg.mxu0
        %v707 = vld [vmem:[%s302] sm:$0x1]
        %v709 = vlaneseq
        %v710 = vshrl.u32 %v709, 7
        %v711 = vsub.s32 0, %v710
        %v712 = vrot.slane %v707, %v711
        %v714 = vadd.f32 %v629, %v712
        %v715 = vadd.f32 %v634, %v712
        %v716 = vadd.f32 %v639, %v712
        %v717 = vadd.f32 %v644, %v712
        %v718 = vadd.f32 %v649, %v712
        %v719 = vadd.f32 %v654, %v712
        %v720 = vadd.f32 %v659, %v712
        %v721 = vadd.f32 %v664, %v712
        %v722 = vadd.f32 %v669, %v712
        %v723 = vadd.f32 %v674, %v712
        %v724 = vadd.f32 %v679, %v712
        %v725 = vadd.f32 %v684, %v712
        %v726 = vadd.f32 %v689, %v712
        %v727 = vadd.f32 %v694, %v712
        %v728 = vadd.f32 %v699, %v712
        %v729 = vadd.f32 %v704, %v712
        %v730 = vxor.u32 %v714, 2147483648
        %v731 = vxor.u32 %v715, 2147483648
        %v732 = vxor.u32 %v716, 2147483648
        %v733 = vxor.u32 %v717, 2147483648
        %v734 = vxor.u32 %v718, 2147483648
        %v735 = vxor.u32 %v719, 2147483648
        %v736 = vxor.u32 %v720, 2147483648
        %v737 = vxor.u32 %v721, 2147483648
        %v738 = vxor.u32 %v722, 2147483648
        %v739 = vxor.u32 %v723, 2147483648
        %v740 = vxor.u32 %v724, 2147483648
        %v741 = vxor.u32 %v725, 2147483648
        %v742 = vxor.u32 %v726, 2147483648
        %v743 = vxor.u32 %v727, 2147483648
        %v744 = vxor.u32 %v728, 2147483648
        %v745 = vxor.u32 %v729, 2147483648
        %v746 = vmul.f32 %v730, 1.442695
        %v747 = vpow.pop %v746
        %v748 = vmul.f32 %v731, 1.442695
        %v749 = vpow.pop %v748
        %v750 = vmul.f32 %v732, 1.442695
        %v751 = vpow.pop %v750
        %v752 = vmul.f32 %v733, 1.442695
        %v753 = vpow.pop %v752
        %v754 = vmul.f32 %v734, 1.442695
        %v755 = vpow.pop %v754
        %v756 = vmul.f32 %v735, 1.442695
        %v757 = vpow.pop %v756
        %v758 = vmul.f32 %v736, 1.442695
        %v759 = vpow.pop %v758
        %v760 = vmul.f32 %v737, 1.442695
        %v761 = vpow.pop %v760
        %v762 = vmul.f32 %v738, 1.442695
        %v763 = vpow.pop %v762
        %v764 = vmul.f32 %v739, 1.442695
        %v765 = vpow.pop %v764
        %v766 = vmul.f32 %v740, 1.442695
        %v767 = vpow.pop %v766
        %v768 = vmul.f32 %v741, 1.442695
        %v769 = vpow.pop %v768
        %v770 = vmul.f32 %v742, 1.442695
        %v771 = vpow.pop %v770
        %v772 = vmul.f32 %v743, 1.442695
        %v773 = vpow.pop %v772
        %v774 = vmul.f32 %v744, 1.442695
        %v775 = vpow.pop %v774
        %v776 = vmul.f32 %v745, 1.442695
        %v777 = vpow.pop %v776
        %v778 = vadd.f32 %v747, 1.0
        %v779 = vadd.f32 %v749, 1.0
        %v780 = vadd.f32 %v751, 1.0
        %v781 = vadd.f32 %v753, 1.0
        %v782 = vadd.f32 %v755, 1.0
        %v783 = vadd.f32 %v757, 1.0
        %v784 = vadd.f32 %v759, 1.0
        %v785 = vadd.f32 %v761, 1.0
        %v786 = vadd.f32 %v763, 1.0
        %v787 = vadd.f32 %v765, 1.0
        %v788 = vadd.f32 %v767, 1.0
        %v789 = vadd.f32 %v769, 1.0
        %v790 = vadd.f32 %v771, 1.0
        %v791 = vadd.f32 %v773, 1.0
        %v792 = vadd.f32 %v775, 1.0
        %v793 = vadd.f32 %v777, 1.0
        %v794 = vrcp.pop %v778
        %v795 = vmul.f32 1.0, %v794
        %v796 = vrcp.pop %v779
        %v797 = vmul.f32 1.0, %v796
        %v798 = vrcp.pop %v780
        %v799 = vmul.f32 1.0, %v798
        %v800 = vrcp.pop %v781
        %v801 = vmul.f32 1.0, %v800
        %v802 = vrcp.pop %v782
        %v803 = vmul.f32 1.0, %v802
        %v804 = vrcp.pop %v783
        %v805 = vmul.f32 1.0, %v804
        %v806 = vrcp.pop %v784
        %v807 = vmul.f32 1.0, %v806
        %v808 = vrcp.pop %v785
        %v809 = vmul.f32 1.0, %v808
        %v810 = vrcp.pop %v786
        %v811 = vmul.f32 1.0, %v810
        %v812 = vrcp.pop %v787
        %v813 = vmul.f32 1.0, %v812
        %v814 = vrcp.pop %v788
        %v815 = vmul.f32 1.0, %v814
        %v816 = vrcp.pop %v789
        %v817 = vmul.f32 1.0, %v816
        %v818 = vrcp.pop %v790
        %v819 = vmul.f32 1.0, %v818
        %v820 = vrcp.pop %v791
        %v821 = vmul.f32 1.0, %v820
        %v822 = vrcp.pop %v792
        %v823 = vmul.f32 1.0, %v822
        %v824 = vrcp.pop %v793
        %v825 = vmul.f32 1.0, %v824
        %v826 = vmul.f32 %v304, %v795
        %v827 = vmul.f32 %v305, %v797
        %v828 = vmul.f32 %v306, %v799
        %v829 = vmul.f32 %v307, %v801
        %v830 = vmul.f32 %v308, %v803
        %v831 = vmul.f32 %v309, %v805
        %v832 = vmul.f32 %v310, %v807
        %v833 = vmul.f32 %v311, %v809
        %v834 = vmul.f32 %v312, %v811
        %v835 = vmul.f32 %v313, %v813
        %v836 = vmul.f32 %v314, %v815
        %v837 = vmul.f32 %v315, %v817
        %v838 = vmul.f32 %v316, %v819
        %v839 = vmul.f32 %v317, %v821
        %v840 = vmul.f32 %v318, %v823
        %v841 = vmul.f32 %v319, %v825
        %842 = vst [vmem:[%s298] sm:$0xff] %v826
        %843 = vst [vmem:[%s298 + $0x8] sm:$0xff] %v827
        %844 = vst [vmem:[%s298 + $0x10] sm:$0xff] %v828
        %845 = vst [vmem:[%s298 + $0x18] sm:$0xff] %v829
        %846 = vst [vmem:[%s298 + $0x20] sm:$0xff] %v830
        %847 = vst [vmem:[%s298 + $0x28] sm:$0xff] %v831
        %848 = vst [vmem:[%s298 + $0x30] sm:$0xff] %v832
        %849 = vst [vmem:[%s298 + $0x38] sm:$0xff] %v833
        %850 = vst [vmem:[%s298 + $0x40] sm:$0xff] %v834
        %851 = vst [vmem:[%s298 + $0x48] sm:$0xff] %v835
        %852 = vst [vmem:[%s298 + $0x50] sm:$0xff] %v836
        %853 = vst [vmem:[%s298 + $0x58] sm:$0xff] %v837
        %854 = vst [vmem:[%s298 + $0x60] sm:$0xff] %v838
        %855 = vst [vmem:[%s298 + $0x68] sm:$0xff] %v839
        %856 = vst [vmem:[%s298 + $0x70] sm:$0xff] %v840
        %857 = vst [vmem:[%s298 + $0x78] sm:$0xff] %v841
        %s858 = sand.u32 %s183, 1
        %s859 = scalar_lea.sflag [#allocation4], %s858
        %s860 = sand.u32 %s183, 1
        %s861 = smul.addr %s860, 128
        %s862 = scalar_lea.vmem [#allocation5], %s861
        // Predicated region
        $region49: #{tpu_custom_call.1} parent=43 // pred_check
          %p863 = pneg %p193
        $region50: #{tpu_custom_call.1} parent=43 // pred_check_branch
          %865 = sbr.rel (%p863) target = $region52
        $region51: #{tpu_custom_call.1} parent=43 // pred_region
          %s866 = smul.u32 16, %s28
          %s868 = ssub.s32 2048, 2048
          %869 = vsyncadd %s859, %s868
          %s870 = smul.addr %s27, 32
          %s871 = sadd.s32 %s866, %s870
          %s872 = smul.addr %s871, 128
          %s873 = scalar_lea.hbm %s6, %s872
          %s874 = sshll.u32 %s862, 4
          %s875 = int_to_ptr.vmem [resolvable:$true] %s874
          %880 = dma.vmem_to_hbm [thread:$0]  %s875, 2048, %s873, %s859, 128, 128, 8
        $region52: #{tpu_custom_call.1} parent=43 // pred_fallthru
          _
      $region44: #{tpu_custom_call.1} parent=5 // pred_fallthru
        _
      %p881 = scmp.le.s32.totalorder 2, %s18
      // Predicated region
      $region53: #{tpu_custom_call.1} parent=5 // pred_check
        %p882 = pneg %p881
      $region54: #{tpu_custom_call.1} parent=5 // pred_check_branch
        %884 = sbr.rel (%p882) target = $region56
      $region55: #{tpu_custom_call.1} parent=5 // pred_region
        %s885 = ssub.s32 %s18, 2
        // Predicated region
        $region57: #{tpu_custom_call.1} parent=55 // pred_check
          %p886 = pneg %p199
        $region58: #{tpu_custom_call.1} parent=55 // pred_check_branch
          %888 = sbr.rel (%p886) target = $region60
        $region59: #{tpu_custom_call.1} parent=55 // pred_region
          %s889 = sand.u32 %s184, 1
          %s890 = scalar_lea.sflag [#allocation4], %s889
          %s891 = sand.u32 %s184, 1
          %s892 = smul.addr %s891, 128
          %s893 = scalar_lea.vmem [#allocation5], %s892
          %894 = dma.done %s890, 2048
        $region60: #{tpu_custom_call.1} parent=55 // pred_fallthru
          _
      $region56: #{tpu_custom_call.1} parent=5 // pred_fallthru
        _
    $region6: #{tpu_custom_call.1} parent=1 // loop_footer
      %s22 = sadd.s32 1, %s18
    $region7: #{tpu_custom_call.1} parent=1 // loop_footer_branch
      %17 = sbr.rel target = $region3
    $region8: #{tpu_custom_call.1} parent=1 // loop_exit
      _
    %895 = vsyncpa [#allocation3], 1
    %s896 = scalar_lea.sflag [#allocation3], 1
    %897 = vsyncpa %s896, 1
    %898 = vsyncpa [#allocation4], 1
    %s899 = scalar_lea.sflag [#allocation4], 1
    %900 = vsyncpa %s899, 1

// kernel: tpu_custom_call.1
$region0: #{tpu_custom_call.1}
  #allocation0 [shape = 'u32[]', space=smem, size = 0x4, offset = 0x4, fixed_abs, tag = 'smem constant byte address 0x4 - core index']
  #allocation1 [shape = 'u32[144,128]{1,0:T(1,128)}', space=vmem, size = 0x12000, scoped, tag = 'internal scratch']
  %s0 = inlined_call_operand.hbm [shape: f32[2,256,128], index: 0, kind: input, shape index: {}]
  %s1 = inlined_call_operand.vmem [shape: f32[2,1,128], index: 1, kind: input, shape index: {}]
  %s2 = inlined_call_operand.vmem [shape: f32[128,16], index: 2, kind: input, shape index: {}]
  %s3 = inlined_call_operand.vmem [shape: f32[1,16], index: 3, kind: input, shape index: {}]
  %s4 = inlined_call_operand.vmem [shape: f32[16,128], index: 4, kind: input, shape index: {}]
  %s5 = inlined_call_operand.vmem [shape: f32[1,128], index: 5, kind: input, shape index: {}]
  %s6 = inlined_call_operand.hbm [shape: f32[2,256,128], index: 6, kind: output, shape index: {}]
  %s7 = sld [smem:[#allocation0]]
  $region61: #{tpu_custom_call.1} parent=0
    _
  %s9 = ssub.s32 1, %s7
  %s10 = scalar_select 0, %s9, %s7
  $region1: #{tpu_custom_call.1} parent=0
    #allocation2 [shape = 'u8[131072]{0}', space=vmem, size = 0x20000, scoped, tag = 'input window, operand 0']
    #allocation3 [shape = 's32[2]{0}', space=sflag, size = 0x8, scoped, tag = 'scoped memory for tpu_custom_call.1']
    #allocation4 [shape = 's32[2]{0}', space=sflag, size = 0x8, scoped, tag = 'scoped memory for tpu_custom_call.1']
    #allocation5 [shape = 'u8[131072]{0}', space=vmem, size = 0x20000, scoped, tag = 'output window, operand 0']
    %11 = vsyncpa [#allocation3], 0
    %s12 = scalar_lea.sflag [#allocation3], 1
    %13 = vsyncpa %s12, 0
    %14 = vsyncpa [#allocation4], 0
    %s15 = scalar_lea.sflag [#allocation4], 1
    %16 = vsyncpa %s15, 0
    loop: start=0, step=1, limit=6
    $region2: #{tpu_custom_call.1} parent=1 // loop_pre_header
      _
    $region3: #{tpu_custom_call.1} parent=1 // loop_header
      %s18 = sphi 0, %s22
      %p19 = scmp.ge.s32.totalorder %s18, 6
      %s25 = sphi 0, %s37
      %s26 = sphi 0, %s33
      %s27 = sphi 0, %s25
      %s28 = sphi 0, %s26
      %s29 = sphi 0, %s27
      %s30 = sphi 0, %s28
      %s42 = sphi 0, %s44
      %s45 = sphi 0, %s42
      %s46 = sphi 0, %s45
      %s62 = sphi 0, %s46
      %s68 = sphi 0, %s70
      %s71 = sphi 0, %s68
      %s72 = sphi 0, %s71
      %s88 = sphi 0, %s72
      %s92 = sphi 0, %s92
      %s94 = sphi 0, %s92
      %s95 = sphi 0, %s94
      %s109 = sphi 0, %s95
      %s113 = sphi 0, %s113
      %s115 = sphi 0, %s113
      %s116 = sphi 0, %s115
      %s130 = sphi 0, %s116
      %s134 = sphi 0, %s134
      %s136 = sphi 0, %s134
      %s137 = sphi 0, %s136
      %s151 = sphi 0, %s137
      %s155 = sphi 0, %s155
      %s157 = sphi 0, %s155
      %s158 = sphi 0, %s157
      %s172 = sphi 0, %s158
      %s180 = sphi 0, %s182
      %s183 = sphi 0, %s180
      %s184 = sphi 0, %s183
      %s200 = sphi 0, %s184
    $region4: #{tpu_custom_call.1} parent=1 // loop_header_branch
      %21 = sbr.rel (%p19) target = $region8
    $region5: #{tpu_custom_call.1} parent=1 // loop_body
      %s23 = ssub.s32 %s18, 1
      %s24 = ssub.s32 %s18, 2
      %s31 = sadd.s32 1, %s26
      %p32 = scmp.ge.s32.totalorder %s31, 2
      %s33 = scalar_select %p32, 0, %s31
      %s34 = sadd.s32 1, %s25
      %s35 = scalar_select %p32, %s34, %s25
      %p36 = scmp.ge.s32.totalorder %s35, 2
      %s37 = scalar_select %p36, 0, %s35
      %s38 = ssub.s32 %s25, %s37
      %s39 = ssub.s32 %s26, %s33
      %s40 = sor.u32 %s38, %s39
      %p41 = scmp.eq.s32.totalorder %s40, 0
      %s43 = sadd.s32 %s42, 1
      %s44 = scalar_select %p41, %s42, %s43
      %p47 = pneg %p41
      %p48 = scmp.eq.s32.totalorder %s18, 3
      %p49 = por %p47, %p48
      %p50 = scmp.ne.s32.totalorder %s42, %s45
      %p51 = scmp.eq.s32.totalorder %s18, 0
      %p52 = por %p50, %p51
      %p53 = scmp.ne.s32.totalorder %s42, %s45
      %p54 = scmp.eq.s32.totalorder %s23, 3
      %p55 = por %p53, %p54
      %p56 = scmp.ne.s32.totalorder %s45, %s46
      %p57 = scmp.eq.s32.totalorder %s23, 0
      %p58 = por %p56, %p57
      %p59 = scmp.ne.s32.totalorder %s45, %s46
      %p60 = scmp.eq.s32.totalorder %s24, 3
      %p61 = por %p59, %p60
      %p63 = scmp.ne.s32.totalorder %s46, %s62
      %p64 = scmp.eq.s32.totalorder %s24, 0
      %p65 = por %p63, %p64
      %s66 = ssub.s32 %s25, %s37
      %p67 = scmp.eq.s32.totalorder %s66, 0
      %s69 = sadd.s32 %s68, 1
      %s70 = scalar_select %p67, %s68, %s69
      %p73 = pneg %p67
      %p74 = scmp.eq.s32.totalorder %s18, 3
      %p75 = por %p73, %p74
      %p76 = scmp.ne.s32.totalorder %s68, %s71
      %p77 = scmp.eq.s32.totalorder %s18, 0
      %p78 = por %p76, %p77
      %p79 = scmp.ne.s32.totalorder %s68, %s71
      %p80 = scmp.eq.s32.totalorder %s23, 3
      %p81 = por %p79, %p80
      %p82 = scmp.ne.s32.totalorder %s71, %s72
      %p83 = scmp.eq.s32.totalorder %s23, 0
      %p84 = por %p82, %p83
      %p85 = scmp.ne.s32.totalorder %s71, %s72
      %p86 = scmp.eq.s32.totalorder %s24, 3
      %p87 = por %p85, %p86
      %p89 = scmp.ne.s32.totalorder %s72, %s88
      %p90 = scmp.eq.s32.totalorder %s24, 0
      %p91 = por %p89, %p90
      %s93 = sadd.s32 %s92, 1
      %p96 = scmp.eq.s32.totalorder %s18, 3
      %p97 = scmp.ne.s32.totalorder %s92, %s94
      %p98 = scmp.eq.s32.totalorder %s18, 0
      %p99 = por %p97, %p98
      %p100 = scmp.ne.s32.totalorder %s92, %s94
      %p101 = scmp.eq.s32.totalorder %s23, 3
      %p102 = por %p100, %p101
      %p103 = scmp.ne.s32.totalorder %s94, %s95
      %p104 = scmp.eq.s32.totalorder %s23, 0
      %p105 = por %p103, %p104
      %p106 = scmp.ne.s32.totalorder %s94, %s95
      %p107 = scmp.eq.s32.totalorder %s24, 3
      %p108 = por %p106, %p107
      %p110 = scmp.ne.s32.totalorder %s95, %s109
      %p111 = scmp.eq.s32.totalorder %s24, 0
      %p112 = por %p110, %p111
      %s114 = sadd.s32 %s113, 1
      %p117 = scmp.eq.s32.totalorder %s18, 3
      %p118 = scmp.ne.s32.totalorder %s113, %s115
      %p119 = scmp.eq.s32.totalorder %s18, 0
      %p120 = por %p118, %p119
      %p121 = scmp.ne.s32.totalorder %s113, %s115
      %p122 = scmp.eq.s32.totalorder %s23, 3
      %p123 = por %p121, %p122
      %p124 = scmp.ne.s32.totalorder %s115, %s116
      %p125 = scmp.eq.s32.totalorder %s23, 0
      %p126 = por %p124, %p125
      %p127 = scmp.ne.s32.totalorder %s115, %s116
      %p128 = scmp.eq.s32.totalorder %s24, 3
      %p129 = por %p127, %p128
      %p131 = scmp.ne.s32.totalorder %s116, %s130
      %p132 = scmp.eq.s32.totalorder %s24, 0
      %p133 = por %p131, %p132
      %s135 = sadd.s32 %s134, 1
      %p138 = scmp.eq.s32.totalorder %s18, 3
      %p139 = scmp.ne.s32.totalorder %s134, %s136
      %p140 = scmp.eq.s32.totalorder %s18, 0
      %p141 = por %p139, %p140
      %p142 = scmp.ne.s32.totalorder %s134, %s136
      %p143 = scmp.eq.s32.totalorder %s23, 3
      %p144 = por %p142, %p143
      %p145 = scmp.ne.s32.totalorder %s136, %s137
      %p146 = scmp.eq.s32.totalorder %s23, 0
      %p147 = por %p145, %p146
      %p148 = scmp.ne.s32.totalorder %s136, %s137
      %p149 = scmp.eq.s32.totalorder %s24, 3
      %p150 = por %p148, %p149
      %p152 = scmp.ne.s32.totalorder %s137, %s151
      %p153 = scmp.eq.s32.totalorder %s24, 0
      %p154 = por %p152, %p153
      %s156 = sadd.s32 %s155, 1
      %p159 = scmp.eq.s32.totalorder %s18, 3
      %p160 = scmp.ne.s32.totalorder %s155, %s157
      %p161 = scmp.eq.s32.totalorder %s18, 0
      %p162 = por %p160, %p161
      %p163 = scmp.ne.s32.totalorder %s155, %s157
      %p164 = scmp.eq.s32.totalorder %s23, 3
      %p165 = por %p163, %p164
      %p166 = scmp.ne.s32.totalorder %s157, %s158
      %p167 = scmp.eq.s32.totalorder %s23, 0
      %p168 = por %p166, %p167
      %p169 = scmp.ne.s32.totalorder %s157, %s158
      %p170 = scmp.eq.s32.totalorder %s24, 3
      %p171 = por %p169, %p170
      %p173 = scmp.ne.s32.totalorder %s158, %s172
      %p174 = scmp.eq.s32.totalorder %s24, 0
      %p175 = por %p173, %p174
      %s176 = ssub.s32 %s25, %s37
      %s177 = ssub.s32 %s26, %s33
      %s178 = sor.u32 %s176, %s177
      %p179 = scmp.eq.s32.totalorder %s178, 0
      %s181 = sadd.s32 %s180, 1
      %s182 = scalar_select %p179, %s180, %s181
      %p185 = pneg %p179
      %p186 = scmp.eq.s32.totalorder %s18, 3
      %p187 = por %p185, %p186
      %p188 = scmp.ne.s32.totalorder %s180, %s183
      %p189 = scmp.eq.s32.totalorder %s18, 0
      %p190 = por %p188, %p189
      %p191 = scmp.ne.s32.totalorder %s180, %s183
      %p192 = scmp.eq.s32.totalorder %s23, 3
      %p193 = por %p191, %p192
      %p194 = scmp.ne.s32.totalorder %s183, %s184
      %p195 = scmp.eq.s32.totalorder %s23, 0
      %p196 = por %p194, %p195
      %p197 = scmp.ne.s32.totalorder %s183, %s184
      %p198 = scmp.eq.s32.totalorder %s24, 3
      %p199 = por %p197, %p198
      %p201 = scmp.ne.s32.totalorder %s184, %s200
      %p202 = scmp.eq.s32.totalorder %s24, 0
      %p203 = por %p201, %p202
      %p204 = scmp.le.s32.totalorder 1, %s18
      %p205 = scmp.lt.s32.totalorder %s18, 5
      %p206 = pnand %p204, %p205
      %p207 = pneg %p206
      // Predicated region
      $region9: #{tpu_custom_call.1} parent=5 // pred_check
        _
      $region10: #{tpu_custom_call.1} parent=5 // pred_check_branch
        %209 = sbr.rel (%p206) target = $region12
      $region11: #{tpu_custom_call.1} parent=5 // pred_region
        %s210 = ssub.s32 %s18, 1
        // Predicated region
        $region13: #{tpu_custom_call.1} parent=11 // pred_check
          %p211 = pneg %p105
        $region14: #{tpu_custom_call.1} parent=11 // pred_check_branch
          %213 = sbr.rel (%p211) target = $region16
        $region15: #{tpu_custom_call.1} parent=11 // pred_region
          _
        $region16: #{tpu_custom_call.1} parent=11 // pred_fallthru
          _
        // Predicated region
        $region17: #{tpu_custom_call.1} parent=11 // pred_check
          %p214 = pneg %p126
        $region18: #{tpu_custom_call.1} parent=11 // pred_check_branch
          %216 = sbr.rel (%p214) target = $region20
        $region19: #{tpu_custom_call.1} parent=11 // pred_region
          _
        $region20: #{tpu_custom_call.1} parent=11 // pred_fallthru
          _
        // Predicated region
        $region21: #{tpu_custom_call.1} parent=11 // pred_check
          %p217 = pneg %p147
        $region22: #{tpu_custom_call.1} parent=11 // pred_check_branch
          %219 = sbr.rel (%p217) target = $region24
        $region23: #{tpu_custom_call.1} parent=11 // pred_region
          _
        $region24: #{tpu_custom_call.1} parent=11 // pred_fallthru
          _
        // Predicated region
        $region25: #{tpu_custom_call.1} parent=11 // pred_check
          %p220 = pneg %p168
        $region26: #{tpu_custom_call.1} parent=11 // pred_check_branch
          %222 = sbr.rel (%p220) target = $region28
        $region27: #{tpu_custom_call.1} parent=11 // pred_region
          _
        $region28: #{tpu_custom_call.1} parent=11 // pred_fallthru
          _
      $region12: #{tpu_custom_call.1} parent=5 // pred_fallthru
        _
      %p223 = scmp.lt.s32.totalorder %s18, 4
      // Predicated region
      $region29: #{tpu_custom_call.1} parent=5 // pred_check
        %p224 = pneg %p223
      $region30: #{tpu_custom_call.1} parent=5 // pred_check_branch
        %226 = sbr.rel (%p224) target = $region32
      $region31: #{tpu_custom_call.1} parent=5 // pred_region
        // Predicated region
        $region33: #{tpu_custom_call.1} parent=31 // pred_check
          %p227 = pneg %p52
        $region34: #{tpu_custom_call.1} parent=31 // pred_check_branch
          %229 = sbr.rel (%p227) target = $region36
        $region35: #{tpu_custom_call.1} parent=31 // pred_region
          %s230 = sand.u32 %s42, 1
          %s231 = scalar_lea.sflag [#allocation3], %s230
          %s232 = sand.u32 %s42, 1
          %s233 = smul.addr %s232, 128
          %s234 = scalar_lea.vmem [#allocation2], %s233
          %s235 = smul.u32 16, %s26
          %s237 = ssub.s32 2048, 2048
          %238 = vsyncadd %s231, %s237
          %s239 = smul.addr %s25, 32
          %s240 = sadd.s32 %s235, %s239
          %s241 = smul.addr %s240, 128
          %s242 = scalar_lea.hbm %s0, %s241
          %s243 = sshll.u32 %s234, 4
          %s244 = int_to_ptr.vmem [resolvable:$true] %s243
          %249 = dma.hbm_to_vmem [thread:$0]  %s242, 2048, %s244, %s231, 128, 128, 8
        $region36: #{tpu_custom_call.1} parent=31 // pred_fallthru
          _
        // Predicated region
        $region37: #{tpu_custom_call.1} parent=31 // pred_check
          %p250 = pneg %p78
        $region38: #{tpu_custom_call.1} parent=31 // pred_check_branch
          %252 = sbr.rel (%p250) target = $region40
        $region39: #{tpu_custom_call.1} parent=31 // pred_region
          %p253 = scmp.lt.s32.totalorder %s25, 1
          %s254 = scalar_select %p253, %s25, 1
          %s255 = scalar_lea.vmem %s1, %s254
        $region40: #{tpu_custom_call.1} parent=31 // pred_fallthru
          _
      $region32: #{tpu_custom_call.1} parent=5 // pred_fallthru
        _
      %p256 = scmp.le.s32.totalorder 1, %s18
      %p257 = scmp.lt.s32.totalorder %s18, 5
      %p258 = pnand %p256, %p257
      %p259 = pneg %p258
      // Predicated region
      $region41: #{tpu_custom_call.1} parent=5 // pred_check
        _
      $region42: #{tpu_custom_call.1} parent=5 // pred_check_branch
        %261 = sbr.rel (%p258) target = $region44
      $region43: #{tpu_custom_call.1} parent=5 // pred_region
        %s262 = ssub.s32 %s18, 1
        %s263 = sand.u32 %s45, 1
        %s264 = scalar_lea.sflag [#allocation3], %s263
        %s265 = sand.u32 %s45, 1
        %s266 = smul.addr %s265, 128
        %s267 = scalar_lea.vmem [#allocation2], %s266
        // Predicated region
        $region45: #{tpu_custom_call.1} parent=43 // pred_check
          %p268 = pneg %p58
        $region46: #{tpu_custom_call.1} parent=43 // pred_check_branch
          %270 = sbr.rel (%p268) target = $region48
        $region47: #{tpu_custom_call.1} parent=43 // pred_region
          %271 = dma.done %s264, 2048
        $region48: #{tpu_custom_call.1} parent=43 // pred_fallthru
          _
        %s272 = sand.u32 %s45, 1
        %s273 = scalar_lea.sflag [#allocation3], %s272
        %s274 = sand.u32 %s45, 1
        %s275 = smul.addr %s274, 128
        %s276 = scalar_lea.vmem [#allocation2], %s275
        %p277 = pneg %p58
        %p278 = pneg %p55
        %p279 = scmp.lt.s32.totalorder %s27, 1
        %s280 = scalar_select %p279, %s27, 1
        %s281 = scalar_lea.vmem %s1, %s280
        %p282 = pneg %p84
        %p283 = pneg %p81
        %p284 = pneg %p105
        %p285 = pneg %p102
        %p286 = pneg %p126
        %p287 = pneg %p123
        %p288 = pneg %p147
        %p289 = pneg %p144
        %p290 = pneg %p168
        %p291 = pneg %p165
        %p292 = pneg %p196
        %p293 = pneg %p193
        %s294 = sand.u32 %s183, 1
        %s295 = scalar_lea.sflag [#allocation4], %s294
        %s296 = sand.u32 %s183, 1
        %s297 = smul.addr %s296, 128
        %s298 = scalar_lea.vmem [#allocation5], %s297
        %s299 = smul.u32 16, %s28
        %p300 = scmp.lt.s32.totalorder %s27, 1
        %s301 = scalar_select %p300, %s27, 1
        %s302 = scalar_lea.vmem %s1, %s301
        %s303 = smul.u32 16, %s28
        %v304 = vld [vmem:[%s267] sm:$0xff]
        %v305 = vld [vmem:[%s267 + $0x8] sm:$0xff]
        %v306 = vld [vmem:[%s267 + $0x10] sm:$0xff]
        %v307 = vld [vmem:[%s267 + $0x18] sm:$0xff]
        %v308 = vld [vmem:[%s267 + $0x20] sm:$0xff]
        %v309 = vld [vmem:[%s267 + $0x28] sm:$0xff]
        %v310 = vld [vmem:[%s267 + $0x30] sm:$0xff]
        %v311 = vld [vmem:[%s267 + $0x38] sm:$0xff]
        %v312 = vld [vmem:[%s267 + $0x40] sm:$0xff]
        %v313 = vld [vmem:[%s267 + $0x48] sm:$0xff]
        %v314 = vld [vmem:[%s267 + $0x50] sm:$0xff]
        %v315 = vld [vmem:[%s267 + $0x58] sm:$0xff]
        %v316 = vld [vmem:[%s267 + $0x60] sm:$0xff]
        %v317 = vld [vmem:[%s267 + $0x68] sm:$0xff]
        %v318 = vld [vmem:[%s267 + $0x70] sm:$0xff]
        %v319 = vld [vmem:[%s267 + $0x78] sm:$0xff]
        %v320 = vld [vmem:[%s2] sm:$0xff]
        %v321 = vld [vmem:[%s2 + $0x8] sm:$0xff]
        %v322 = vld [vmem:[%s2 + $0x10] sm:$0xff]
        %v323 = vld [vmem:[%s2 + $0x18] sm:$0xff]
        %v324 = vld [vmem:[%s2 + $0x20] sm:$0xff]
        %v325 = vld [vmem:[%s2 + $0x28] sm:$0xff]
        %v326 = vld [vmem:[%s2 + $0x30] sm:$0xff]
        %v327 = vld [vmem:[%s2 + $0x38] sm:$0xff]
        %v328 = vld [vmem:[%s2 + $0x40] sm:$0xff]
        %v329 = vld [vmem:[%s2 + $0x48] sm:$0xff]
        %v330 = vld [vmem:[%s2 + $0x50] sm:$0xff]
        %v331 = vld [vmem:[%s2 + $0x58] sm:$0xff]
        %v332 = vld [vmem:[%s2 + $0x60] sm:$0xff]
        %v333 = vld [vmem:[%s2 + $0x68] sm:$0xff]
        %v334 = vld [vmem:[%s2 + $0x70] sm:$0xff]
        %v335 = vld [vmem:[%s2 + $0x78] sm:$0xff]
        %v336 = vld [vmem:[%s3] sm:$0x1]
        %v338 = vlaneseq
        %v339 = vshrl.u32 %v338, 7
        %v340 = vsub.s32 0, %v339
        %v341 = vrot.slane %v336, %v340
        %343 = vmatprep.subr.mxu0 0.0
        %344 = vmatpush1.msra.mxu0 %v335
        %345 = vmatprep.subr.mxu0 0.0
        %346 = vmatpush1.msra.mxu0 %v334
        %347 = vmatprep.subr.mxu0 0.0
        %348 = vmatpush1.msra.mxu0 %v333
        %349 = vmatprep.subr.mxu0 0.0
        %350 = vmatpush1.msra.mxu0 %v332
        %351 = vmatprep.subr.mxu0 0.0
        %352 = vmatpush1.msra.mxu0 %v331
        %353 = vmatprep.subr.mxu0 0.0
        %354 = vmatpush1.msra.mxu0 %v330
        %355 = vmatprep.subr.mxu0 0.0
        %356 = vmatpush1.msra.mxu0 %v329
        %357 = vmatprep.subr.mxu0 0.0
        %358 = vmatpush1.msra.mxu0 %v328
        %359 = vmatprep.subr.mxu0 0.0
        %360 = vmatpush1.msra.mxu0 %v327
        %361 = vmatprep.subr.mxu0 0.0
        %362 = vmatpush1.msra.mxu0 %v326
        %363 = vmatprep.subr.mxu0 0.0
        %364 = vmatpush1.msra.mxu0 %v325
        %365 = vmatprep.subr.mxu0 0.0
        %366 = vmatpush1.msra.mxu0 %v324
        %367 = vmatprep.subr.mxu0 0.0
        %368 = vmatpush1.msra.mxu0 %v323
        %369 = vmatprep.subr.mxu0 0.0
        %370 = vmatpush1.msra.mxu0 %v322
        %371 = vmatprep.subr.mxu0 0.0
        %372 = vmatpush1.msra.mxu0 %v321
        %373 = vmatprep.subr.mxu0 0.0
        %374 = vmatpush1.msra.mxu0 %v320
        %375 = vmatprep.subr.mxu0 0.0
        %376 = vmatpush2.msra.mxu0 0.0
        %377 = vmatprep.subr.mxu0 0.0
        %378 = vmatpush2.msra.mxu0 0.0
        %379 = vmatprep.subr.mxu0 0.0
        %380 = vmatpush2.msra.mxu0 0.0
        %381 = vmatprep.subr.mxu0 0.0
        %382 = vmatpush2.msra.mxu0 0.0
        %383 = vmatprep.subr.mxu0 0.0
        %384 = vmatpush2.msra.mxu0 0.0
        %385 = vmatprep.subr.mxu0 0.0
        %386 = vmatpush2.msra.mxu0 0.0
        %387 = vmatprep.subr.mxu0 0.0
        %388 = vmatpush2.msra.mxu0 0.0
        %389 = vmatprep.subr.mxu0 0.0
        %390 = vmatpush2.msra.mxu0 0.0
        %391 = vmatprep.subr.mxu0 0.0
        %392 = vmatpush2.msra.mxu0 0.0
        %393 = vmatprep.subr.mxu0 0.0
        %394 = vmatpush2.msra.mxu0 0.0
        %395 = vmatprep.subr.mxu0 0.0
        %396 = vmatpush2.msra.mxu0 0.0
        %397 = vmatprep.subr.mxu0 0.0
        %398 = vmatpush2.msra.mxu0 0.0
        %399 = vmatprep.subr.mxu0 0.0
        %400 = vmatpush2.msra.mxu0 0.0
        %401 = vmatprep.subr.mxu0 0.0
        %402 = vmatpush2.msra.mxu0 0.0
        %403 = vmatprep.subr.mxu0 0.0
        %404 = vmatpush2.msra.mxu0 0.0
        %405 = vmatprep.subr.mxu0 0.0
        %406 = vmatpush2.msra.mxu0 0.0
        %407 = vmatprep.mubr.f32.mxu0 0.0
        %408 = vmatmul.mubr.f32.gmra.mxu0 %v304
        %v409 = vpop.f32.mrf.mxu0
        %v410 = vadd.f32 %v341, %v409
        %v411 = vpop.f32.mrf.mxu0
        %412 = vmatprep.mubr.f32.mxu0 0.0
        %413 = vmatmul.mubr.f32.gmra.mxu0 %v305
        %v414 = vpop.f32.mrf.mxu0
        %v415 = vadd.f32 %v341, %v414
        %v416 = vpop.f32.mrf.mxu0
        %417 = vmatprep.mubr.f32.mxu0 0.0
        %418 = vmatmul.mubr.f32.gmra.mxu0 %v306
        %v419 = vpop.f32.mrf.mxu0
        %v420 = vadd.f32 %v341, %v419
        %v421 = vpop.f32.mrf.mxu0
        %422 = vmatprep.mubr.f32.mxu0 0.0
        %423 = vmatmul.mubr.f32.gmra.mxu0 %v307
        %v424 = vpop.f32.mrf.mxu0
        %v425 = vadd.f32 %v341, %v424
        %v426 = vpop.f32.mrf.mxu0
        %427 = vmatprep.mubr.f32.mxu0 0.0
        %428 = vmatmul.mubr.f32.gmra.mxu0 %v308
        %v429 = vpop.f32.mrf.mxu0
        %v430 = vadd.f32 %v341, %v429
        %v431 = vpop.f32.mrf.mxu0
        %432 = vmatprep.mubr.f32.mxu0 0.0
        %433 = vmatmul.mubr.f32.gmra.mxu0 %v309
        %v434 = vpop.f32.mrf.mxu0
        %v435 = vadd.f32 %v341, %v434
        %v436 = vpop.f32.mrf.mxu0
        %437 = vmatprep.mubr.f32.mxu0 0.0
        %438 = vmatmul.mubr.f32.gmra.mxu0 %v310
        %v439 = vpop.f32.mrf.mxu0
        %v440 = vadd.f32 %v341, %v439
        %v441 = vpop.f32.mrf.mxu0
        %442 = vmatprep.mubr.f32.mxu0 0.0
        %443 = vmatmul.mubr.f32.gmra.mxu0 %v311
        %v444 = vpop.f32.mrf.mxu0
        %v445 = vadd.f32 %v341, %v444
        %v446 = vpop.f32.mrf.mxu0
        %447 = vmatprep.mubr.f32.mxu0 0.0
        %448 = vmatmul.mubr.f32.gmra.mxu0 %v312
        %v449 = vpop.f32.mrf.mxu0
        %v450 = vadd.f32 %v341, %v449
        %v451 = vpop.f32.mrf.mxu0
        %452 = vmatprep.mubr.f32.mxu0 0.0
        %453 = vmatmul.mubr.f32.gmra.mxu0 %v313
        %v454 = vpop.f32.mrf.mxu0
        %v455 = vadd.f32 %v341, %v454
        %v456 = vpop.f32.mrf.mxu0
        %457 = vmatprep.mubr.f32.mxu0 0.0
        %458 = vmatmul.mubr.f32.gmra.mxu0 %v314
        %v459 = vpop.f32.mrf.mxu0
        %v460 = vadd.f32 %v341, %v459
        %v461 = vpop.f32.mrf.mxu0
        %462 = vmatprep.mubr.f32.mxu0 0.0
        %463 = vmatmul.mubr.f32.gmra.mxu0 %v315
        %v464 = vpop.f32.mrf.mxu0
        %v465 = vadd.f32 %v341, %v464
        %v466 = vpop.f32.mrf.mxu0
        %467 = vmatprep.mubr.f32.mxu0 0.0
        %468 = vmatmul.mubr.f32.gmra.mxu0 %v316
        %v469 = vpop.f32.mrf.mxu0
        %v470 = vadd.f32 %v341, %v469
        %v471 = vpop.f32.mrf.mxu0
        %472 = vmatprep.mubr.f32.mxu0 0.0
        %473 = vmatmul.mubr.f32.gmra.mxu0 %v317
        %v474 = vpop.f32.mrf.mxu0
        %v475 = vadd.f32 %v341, %v474
        %v476 = vpop.f32.mrf.mxu0
        %477 = vmatprep.mubr.f32.mxu0 0.0
        %478 = vmatmul.mubr.f32.gmra.mxu0 %v318
        %v479 = vpop.f32.mrf.mxu0
        %v480 = vadd.f32 %v341, %v479
        %v481 = vpop.f32.mrf.mxu0
        %482 = vmatprep.mubr.f32.mxu0 0.0
        %483 = vmatmul.mubr.f32.gmra.mxu0 %v319
        %v484 = vpop.f32.mrf.mxu0
        %v485 = vadd.f32 %v341, %v484
        %v486 = vpop.f32.mrf.mxu0
        %487 = vdwg.mxu0
        %v488 = vmax.f32 %v410, 0.0
        %v489 = vmax.f32 %v415, 0.0
        %v490 = vmax.f32 %v420, 0.0
        %v491 = vmax.f32 %v425, 0.0
        %v492 = vmax.f32 %v430, 0.0
        %v493 = vmax.f32 %v435, 0.0
        %v494 = vmax.f32 %v440, 0.0
        %v495 = vmax.f32 %v445, 0.0
        %v496 = vmax.f32 %v450, 0.0
        %v497 = vmax.f32 %v455, 0.0
        %v498 = vmax.f32 %v460, 0.0
        %v499 = vmax.f32 %v465, 0.0
        %v500 = vmax.f32 %v470, 0.0
        %v501 = vmax.f32 %v475, 0.0
        %v502 = vmax.f32 %v480, 0.0
        %v503 = vmax.f32 %v485, 0.0
        %v504 = vld [vmem:[%s4] sm:$0xff]
        %v505 = vld [vmem:[%s4 + $0x8] sm:$0xff]
        %v506 = vld [vmem:[%s5] sm:$0x1]
        %v508 = vlaneseq
        %v509 = vshrl.u32 %v508, 7
        %v510 = vsub.s32 0, %v509
        %v511 = vrot.slane %v506, %v510
        %vm513 = vcmask 130048
        %v515 = vsel %vm513, %v488, 0
        %v518 = vsel %vm513, %v489, 0
        %v521 = vsel %vm513, %v490, 0
        %v524 = vsel %vm513, %v491, 0
        %v527 = vsel %vm513, %v492, 0
        %v530 = vsel %vm513, %v493, 0
        %v533 = vsel %vm513, %v494, 0
        %v536 = vsel %vm513, %v495, 0
        %v539 = vsel %vm513, %v496, 0
        %v542 = vsel %vm513, %v497, 0
        %v545 = vsel %vm513, %v498, 0
        %v548 = vsel %vm513, %v499, 0
        %v551 = vsel %vm513, %v500, 0
        %v554 = vsel %vm513, %v501, 0
        %v557 = vsel %vm513, %v502, 0
        %v560 = vsel %vm513, %v503, 0
        %562 = vmatprep.subr.mxu0 0.0
        %563 = vmatpush1.msra.mxu0 0.0
        %564 = vmatprep.subr.mxu0 0.0
        %565 = vmatpush1.msra.mxu0 0.0
        %566 = vmatprep.subr.mxu0 0.0
        %567 = vmatpush1.msra.mxu0 0.0
        %568 = vmatprep.subr.mxu0 0.0
        %569 = vmatpush1.msra.mxu0 0.0
        %570 = vmatprep.subr.mxu0 0.0
        %571 = vmatpush1.msra.mxu0 0.0
        %572 = vmatprep.subr.mxu0 0.0
        %573 = vmatpush1.msra.mxu0 0.0
        %574 = vmatprep.subr.mxu0 0.0
        %575 = vmatpush1.msra.mxu0 0.0
        %576 = vmatprep.subr.mxu0 0.0
        %577 = vmatpush1.msra.mxu0 0.0
        %578 = vmatprep.subr.mxu0 0.0
        %579 = vmatpush1.msra.mxu0 0.0
        %580 = vmatprep.subr.mxu0 0.0
        %581 = vmatpush1.msra.mxu0 0.0
        %582 = vmatprep.subr.mxu0 0.0
        %583 = vmatpush1.msra.mxu0 0.0
        %584 = vmatprep.subr.mxu0 0.0
        %585 = vmatpush1.msra.mxu0 0.0
        %586 = vmatprep.subr.mxu0 0.0
        %587 = vmatpush1.msra.mxu0 0.0
        %588 = vmatprep.subr.mxu0 0.0
        %589 = vmatpush1.msra.mxu0 0.0
        %590 = vmatprep.subr.mxu0 0.0
        %591 = vmatpush1.msra.mxu0 %v505
        %592 = vmatprep.subr.mxu0 0.0
        %593 = vmatpush1.msra.mxu0 %v504
        %594 = vmatprep.subr.mxu0 0.0
        %595 = vmatpush2.msra.mxu0 0.0
        %596 = vmatprep.subr.mxu0 0.0
        %597 = vmatpush2.msra.mxu0 0.0
        %598 = vmatprep.subr.mxu0 0.0
        %599 = vmatpush2.msra.mxu0 0.0
        %600 = vmatprep.subr.mxu0 0.0
        %601 = vmatpush2.msra.mxu0 0.0
        %602 = vmatprep.subr.mxu0 0.0
        %603 = vmatpush2.msra.mxu0 0.0
        %604 = vmatprep.subr.mxu0 0.0
        %605 = vmatpush2.msra.mxu0 0.0
        %606 = vmatprep.subr.mxu0 0.0
        %607 = vmatpush2.msra.mxu0 0.0
        %608 = vmatprep.subr.mxu0 0.0
        %609 = vmatpush2.msra.mxu0 0.0
        %610 = vmatprep.subr.mxu0 0.0
        %611 = vmatpush2.msra.mxu0 0.0
        %612 = vmatprep.subr.mxu0 0.0
        %613 = vmatpush2.msra.mxu0 0.0
        %614 = vmatprep.subr.mxu0 0.0
        %615 = vmatpush2.msra.mxu0 0.0
        %616 = vmatprep.subr.mxu0 0.0
        %617 = vmatpush2.msra.mxu0 0.0
        %618 = vmatprep.subr.mxu0 0.0
        %619 = vmatpush2.msra.mxu0 0.0
        %620 = vmatprep.subr.mxu0 0.0
        %621 = vmatpush2.msra.mxu0 0.0
        %622 = vmatprep.subr.mxu0 0.0
        %623 = vmatpush2.msra.mxu0 0.0
        %624 = vmatprep.subr.mxu0 0.0
        %625 = vmatpush2.msra.mxu0 0.0
        %626 = vmatprep.mubr.f32.mxu0 0.0
        %627 = vmatmul.mubr.f32.gmra.mxu0 %v515
        %v628 = vpop.f32.mrf.mxu0
        %v629 = vadd.f32 %v511, %v628
        %v630 = vpop.f32.mrf.mxu0
        %631 = vmatprep.mubr.f32.mxu0 0.0
        %632 = vmatmul.mubr.f32.gmra.mxu0 %v518
        %v633 = vpop.f32.mrf.mxu0
        %v634 = vadd.f32 %v511, %v633
        %v635 = vpop.f32.mrf.mxu0
        %636 = vmatprep.mubr.f32.mxu0 0.0
        %637 = vmatmul.mubr.f32.gmra.mxu0 %v521
        %v638 = vpop.f32.mrf.mxu0
        %v639 = vadd.f32 %v511, %v638
        %v640 = vpop.f32.mrf.mxu0
        %641 = vmatprep.mubr.f32.mxu0 0.0
        %642 = vmatmul.mubr.f32.gmra.mxu0 %v524
        %v643 = vpop.f32.mrf.mxu0
        %v644 = vadd.f32 %v511, %v643
        %v645 = vpop.f32.mrf.mxu0
        %646 = vmatprep.mubr.f32.mxu0 0.0
        %647 = vmatmul.mubr.f32.gmra.mxu0 %v527
        %v648 = vpop.f32.mrf.mxu0
        %v649 = vadd.f32 %v511, %v648
        %v650 = vpop.f32.mrf.mxu0
        %651 = vmatprep.mubr.f32.mxu0 0.0
        %652 = vmatmul.mubr.f32.gmra.mxu0 %v530
        %v653 = vpop.f32.mrf.mxu0
        %v654 = vadd.f32 %v511, %v653
        %v655 = vpop.f32.mrf.mxu0
        %656 = vmatprep.mubr.f32.mxu0 0.0
        %657 = vmatmul.mubr.f32.gmra.mxu0 %v533
        %v658 = vpop.f32.mrf.mxu0
        %v659 = vadd.f32 %v511, %v658
        %v660 = vpop.f32.mrf.mxu0
        %661 = vmatprep.mubr.f32.mxu0 0.0
        %662 = vmatmul.mubr.f32.gmra.mxu0 %v536
        %v663 = vpop.f32.mrf.mxu0
        %v664 = vadd.f32 %v511, %v663
        %v665 = vpop.f32.mrf.mxu0
        %666 = vmatprep.mubr.f32.mxu0 0.0
        %667 = vmatmul.mubr.f32.gmra.mxu0 %v539
        %v668 = vpop.f32.mrf.mxu0
        %v669 = vadd.f32 %v511, %v668
        %v670 = vpop.f32.mrf.mxu0
        %671 = vmatprep.mubr.f32.mxu0 0.0
        %672 = vmatmul.mubr.f32.gmra.mxu0 %v542
        %v673 = vpop.f32.mrf.mxu0
        %v674 = vadd.f32 %v511, %v673
        %v675 = vpop.f32.mrf.mxu0
        %676 = vmatprep.mubr.f32.mxu0 0.0
        %677 = vmatmul.mubr.f32.gmra.mxu0 %v545
        %v678 = vpop.f32.mrf.mxu0
        %v679 = vadd.f32 %v511, %v678
        %v680 = vpop.f32.mrf.mxu0
        %681 = vmatprep.mubr.f32.mxu0 0.0
        %682 = vmatmul.mubr.f32.gmra.mxu0 %v548
        %v683 = vpop.f32.mrf.mxu0
        %v684 = vadd.f32 %v511, %v683
        %v685 = vpop.f32.mrf.mxu0
        %686 = vmatprep.mubr.f32.mxu0 0.0
        %687 = vmatmul.mubr.f32.gmra.mxu0 %v551
        %v688 = vpop.f32.mrf.mxu0
        %v689 = vadd.f32 %v511, %v688
        %v690 = vpop.f32.mrf.mxu0
        %691 = vmatprep.mubr.f32.mxu0 0.0
        %692 = vmatmul.mubr.f32.gmra.mxu0 %v554
        %v693 = vpop.f32.mrf.mxu0
        %v694 = vadd.f32 %v511, %v693
        %v695 = vpop.f32.mrf.mxu0
        %696 = vmatprep.mubr.f32.mxu0 0.0
        %697 = vmatmul.mubr.f32.gmra.mxu0 %v557
        %v698 = vpop.f32.mrf.mxu0
        %v699 = vadd.f32 %v511, %v698
        %v700 = vpop.f32.mrf.mxu0
        %701 = vmatprep.mubr.f32.mxu0 0.0
        %702 = vmatmul.mubr.f32.gmra.mxu0 %v560
        %v703 = vpop.f32.mrf.mxu0
        %v704 = vadd.f32 %v511, %v703
        %v705 = vpop.f32.mrf.mxu0
        %706 = vdwg.mxu0
        %v707 = vld [vmem:[%s302] sm:$0x1]
        %v709 = vlaneseq
        %v710 = vshrl.u32 %v709, 7
        %v711 = vsub.s32 0, %v710
        %v712 = vrot.slane %v707, %v711
        %v714 = vadd.f32 %v629, %v712
        %v715 = vadd.f32 %v634, %v712
        %v716 = vadd.f32 %v639, %v712
        %v717 = vadd.f32 %v644, %v712
        %v718 = vadd.f32 %v649, %v712
        %v719 = vadd.f32 %v654, %v712
        %v720 = vadd.f32 %v659, %v712
        %v721 = vadd.f32 %v664, %v712
        %v722 = vadd.f32 %v669, %v712
        %v723 = vadd.f32 %v674, %v712
        %v724 = vadd.f32 %v679, %v712
        %v725 = vadd.f32 %v684, %v712
        %v726 = vadd.f32 %v689, %v712
        %v727 = vadd.f32 %v694, %v712
        %v728 = vadd.f32 %v699, %v712
        %v729 = vadd.f32 %v704, %v712
        %v730 = vxor.u32 %v714, 2147483648
        %v731 = vxor.u32 %v715, 2147483648
        %v732 = vxor.u32 %v716, 2147483648
        %v733 = vxor.u32 %v717, 2147483648
        %v734 = vxor.u32 %v718, 2147483648
        %v735 = vxor.u32 %v719, 2147483648
        %v736 = vxor.u32 %v720, 2147483648
        %v737 = vxor.u32 %v721, 2147483648
        %v738 = vxor.u32 %v722, 2147483648
        %v739 = vxor.u32 %v723, 2147483648
        %v740 = vxor.u32 %v724, 2147483648
        %v741 = vxor.u32 %v725, 2147483648
        %v742 = vxor.u32 %v726, 2147483648
        %v743 = vxor.u32 %v727, 2147483648
        %v744 = vxor.u32 %v728, 2147483648
        %v745 = vxor.u32 %v729, 2147483648
        %v746 = vmul.f32 %v730, 1.442695
        %v747 = vpow.pop %v746
        %v748 = vmul.f32 %v731, 1.442695
        %v749 = vpow.pop %v748
        %v750 = vmul.f32 %v732, 1.442695
        %v751 = vpow.pop %v750
        %v752 = vmul.f32 %v733, 1.442695
        %v753 = vpow.pop %v752
        %v754 = vmul.f32 %v734, 1.442695
        %v755 = vpow.pop %v754
        %v756 = vmul.f32 %v735, 1.442695
        %v757 = vpow.pop %v756
        %v758 = vmul.f32 %v736, 1.442695
        %v759 = vpow.pop %v758
        %v760 = vmul.f32 %v737, 1.442695
        %v761 = vpow.pop %v760
        %v762 = vmul.f32 %v738, 1.442695
        %v763 = vpow.pop %v762
        %v764 = vmul.f32 %v739, 1.442695
        %v765 = vpow.pop %v764
        %v766 = vmul.f32 %v740, 1.442695
        %v767 = vpow.pop %v766
        %v768 = vmul.f32 %v741, 1.442695
        %v769 = vpow.pop %v768
        %v770 = vmul.f32 %v742, 1.442695
        %v771 = vpow.pop %v770
        %v772 = vmul.f32 %v743, 1.442695
        %v773 = vpow.pop %v772
        %v774 = vmul.f32 %v744, 1.442695
        %v775 = vpow.pop %v774
        %v776 = vmul.f32 %v745, 1.442695
        %v777 = vpow.pop %v776
        %v778 = vadd.f32 %v747, 1.0
        %v779 = vadd.f32 %v749, 1.0
        %v780 = vadd.f32 %v751, 1.0
        %v781 = vadd.f32 %v753, 1.0
        %v782 = vadd.f32 %v755, 1.0
        %v783 = vadd.f32 %v757, 1.0
        %v784 = vadd.f32 %v759, 1.0
        %v785 = vadd.f32 %v761, 1.0
        %v786 = vadd.f32 %v763, 1.0
        %v787 = vadd.f32 %v765, 1.0
        %v788 = vadd.f32 %v767, 1.0
        %v789 = vadd.f32 %v769, 1.0
        %v790 = vadd.f32 %v771, 1.0
        %v791 = vadd.f32 %v773, 1.0
        %v792 = vadd.f32 %v775, 1.0
        %v793 = vadd.f32 %v777, 1.0
        %v794 = vrcp.pop %v778
        %v795 = vmul.f32 1.0, %v794
        %v796 = vrcp.pop %v779
        %v797 = vmul.f32 1.0, %v796
        %v798 = vrcp.pop %v780
        %v799 = vmul.f32 1.0, %v798
        %v800 = vrcp.pop %v781
        %v801 = vmul.f32 1.0, %v800
        %v802 = vrcp.pop %v782
        %v803 = vmul.f32 1.0, %v802
        %v804 = vrcp.pop %v783
        %v805 = vmul.f32 1.0, %v804
        %v806 = vrcp.pop %v784
        %v807 = vmul.f32 1.0, %v806
        %v808 = vrcp.pop %v785
        %v809 = vmul.f32 1.0, %v808
        %v810 = vrcp.pop %v786
        %v811 = vmul.f32 1.0, %v810
        %v812 = vrcp.pop %v787
        %v813 = vmul.f32 1.0, %v812
        %v814 = vrcp.pop %v788
        %v815 = vmul.f32 1.0, %v814
        %v816 = vrcp.pop %v789
        %v817 = vmul.f32 1.0, %v816
        %v818 = vrcp.pop %v790
        %v819 = vmul.f32 1.0, %v818
        %v820 = vrcp.pop %v791
        %v821 = vmul.f32 1.0, %v820
        %v822 = vrcp.pop %v792
        %v823 = vmul.f32 1.0, %v822
        %v824 = vrcp.pop %v793
        %v825 = vmul.f32 1.0, %v824
        %v826 = vmul.f32 %v304, %v795
        %v827 = vmul.f32 %v305, %v797
        %v828 = vmul.f32 %v306, %v799
        %v829 = vmul.f32 %v307, %v801
        %v830 = vmul.f32 %v308, %v803
        %v831 = vmul.f32 %v309, %v805
        %v832 = vmul.f32 %v310, %v807
        %v833 = vmul.f32 %v311, %v809
        %v834 = vmul.f32 %v312, %v811
        %v835 = vmul.f32 %v313, %v813
        %v836 = vmul.f32 %v314, %v815
        %v837 = vmul.f32 %v315, %v817
        %v838 = vmul.f32 %v316, %v819
        %v839 = vmul.f32 %v317, %v821
        %v840 = vmul.f32 %v318, %v823
        %v841 = vmul.f32 %v319, %v825
        %842 = vst [vmem:[%s298] sm:$0xff] %v826
        %843 = vst [vmem:[%s298 + $0x8] sm:$0xff] %v827
        %844 = vst [vmem:[%s298 + $0x10] sm:$0xff] %v828
        %845 = vst [vmem:[%s298 + $0x18] sm:$0xff] %v829
        %846 = vst [vmem:[%s298 + $0x20] sm:$0xff] %v830
        %847 = vst [vmem:[%s298 + $0x28] sm:$0xff] %v831
        %848 = vst [vmem:[%s298 + $0x30] sm:$0xff] %v832
        %849 = vst [vmem:[%s298 + $0x38] sm:$0xff] %v833
        %850 = vst [vmem:[%s298 + $0x40] sm:$0xff] %v834
        %851 = vst [vmem:[%s298 + $0x48] sm:$0xff] %v835
        %852 = vst [vmem:[%s298 + $0x50] sm:$0xff] %v836
        %853 = vst [vmem:[%s298 + $0x58] sm:$0xff] %v837
        %854 = vst [vmem:[%s298 + $0x60] sm:$0xff] %v838
        %855 = vst [vmem:[%s298 + $0x68] sm:$0xff] %v839
        %856 = vst [vmem:[%s298 + $0x70] sm:$0xff] %v840
        %857 = vst [vmem:[%s298 + $0x78] sm:$0xff] %v841
        %s858 = sand.u32 %s183, 1
        %s859 = scalar_lea.sflag [#allocation4], %s858
        %s860 = sand.u32 %s183, 1
        %s861 = smul.addr %s860, 128
        %s862 = scalar_lea.vmem [#allocation5], %s861
        // Predicated region
        $region49: #{tpu_custom_call.1} parent=43 // pred_check
          %p863 = pneg %p193
        $region50: #{tpu_custom_call.1} parent=43 // pred_check_branch
          %865 = sbr.rel (%p863) target = $region52
        $region51: #{tpu_custom_call.1} parent=43 // pred_region
          %s866 = smul.u32 16, %s28
          %s868 = ssub.s32 2048, 2048
          %869 = vsyncadd %s859, %s868
          %s870 = smul.addr %s27, 32
          %s871 = sadd.s32 %s866, %s870
          %s872 = smul.addr %s871, 128
          %s873 = scalar_lea.hbm %s6, %s872
          %s874 = sshll.u32 %s862, 4
          %s875 = int_to_ptr.vmem [resolvable:$true] %s874
          %880 = dma.vmem_to_hbm [thread:$0]  %s875, 2048, %s873, %s859, 128, 128, 8
        $region52: #{tpu_custom_call.1} parent=43 // pred_fallthru
          _
      $region44: #{tpu_custom_call.1} parent=5 // pred_fallthru
        _
      %p881 = scmp.le.s32.totalorder 2, %s18
      // Predicated region
      $region53: #{tpu_custom_call.1} parent=5 // pred_check
        %p882 = pneg %p881
      $region54: #{tpu_custom_call.1} parent=5 // pred_check_branch
        %884 = sbr.rel (%p882) target = $region56
      $region55: #{tpu_custom_call.1} parent=5 // pred_region
        %s885 = ssub.s32 %s18, 2
        // Predicated region
        $region57: #{tpu_custom_call.1} parent=55 // pred_check
          %p886 = pneg %p199
        $region58: #{tpu_custom_call.1} parent=55 // pred_check_branch
          %888 = sbr.rel (%p886) target = $region60
        $region59: #{tpu_custom_call.1} parent=55 // pred_region
          %s889 = sand.u32 %s184, 1
          %s890 = scalar_lea.sflag [#allocation4], %s889
          %s891 = sand.u32 %s184, 1
          %s892 = smul.addr %s891, 128
          %s893 = scalar_lea.vmem [#allocation5], %s892
          %894 = dma.done %s890, 2048
        $region60: #{tpu_custom_call.1} parent=55 // pred_fallthru
          _
      $region56: #{tpu_custom_call.1} parent=5 // pred_fallthru
        _
    $region6: #{tpu_custom_call.1} parent=1 // loop_footer
      %s22 = sadd.s32 1, %s18
    $region7: #{tpu_custom_call.1} parent=1 // loop_footer_branch
      %17 = sbr.rel target = $region3
    $region8: #{tpu_custom_call.1} parent=1 // loop_exit
      _
    %895 = vsyncpa [#allocation3], 1
    %s896 = scalar_lea.sflag [#allocation3], 1
    %897 = vsyncpa %s896, 1
    %898 = vsyncpa [#allocation4], 1
    %s899 = scalar_lea.sflag [#allocation4], 1
    %900 = vsyncpa %s899, 1

</llo_original>
